<compile_context>
chip_gen: v5e
topology: v5e:2x2
jax: 0.10.0
libtpu: 0.0.40
codegen_flags: <defaults>
</compile_context>

<pallas_src>
import functools

import jax
import jax.numpy as jnp
from jax.experimental import pallas as pl
from jax.experimental.pallas import tpu as pltpu


COMPUTE_DTYPE = jnp.bfloat16        # MXU input dtype (set to jnp.float32 to disable)
_VMEM_LIMIT = 32 * 1024 * 1024      # safe on v5e/v6e (128 MiB) and v7x (64 MiB)
_TILE_M = 512                       # rows per grid step for the GEMM kernels


def _round_up(x, m):
    return ((x + m - 1) // m) * m


# ----------------------------- Pallas kernels ------------------------------

def _linear_relu_kernel(x_ref, w_ref, b_ref, o_ref):
    # o = relu(x @ w + b); dot inputs are bf16, accumulate + epilogue in f32.
    y = jnp.dot(x_ref[...], w_ref[...], preferred_element_type=jnp.float32)
    o_ref[...] = jnp.maximum(y + b_ref[...], 0.0).astype(o_ref.dtype)


def _fc_heads_kernel(x_ref, wfc_ref, bfc_ref, wh_ref, bh_ref, o_ref, *, head_slices):
    # shared = relu(x @ Wfc + bfc)
    shared = jnp.dot(x_ref[...], wfc_ref[...], preferred_element_type=jnp.float32)
    shared = jnp.maximum(shared + bfc_ref[...], 0.0)
    # logits for all heads at once (heads packed + zero-padded to 128 lanes)
    logits = jnp.dot(shared.astype(wh_ref.dtype), wh_ref[...],
                     preferred_element_type=jnp.float32)
    logits = logits + bh_ref[...]
    # per-head masked softmax; padded columns excluded from max/sum and output 0
    col = jax.lax.broadcasted_iota(jnp.int32, logits.shape, 1)
    out = jnp.zeros_like(logits)
    for (off, dim) in head_slices:          # static Python loop (few heads)
        mask = (col >= off) & (col < off + dim)
        masked = jnp.where(mask, logits, -jnp.inf)
        m = jnp.max(masked, axis=-1, keepdims=True)
        e = jnp.where(mask, jnp.exp(masked - m), 0.0)
        s = jnp.sum(e, axis=-1, keepdims=True)
        r = pl.reciprocal(s, approx=True)   # EUP slot
        r = r * (2.0 - s * r)               # one Newton step -> full precision
        out = out + e * r
    o_ref[...] = out


# ------------------------------ Pallas wrappers -----------------------------

def linear_relu(x, w, b, *, out_dtype=jnp.float32, tile_m=_TILE_M):
    """relu(x @ w + b) with an M-tiled, parallel, double-buffered grid.

    x: (M, K) bf16, w: (K, N) bf16 (N a multiple of 128 -> lane-dense stores),
    b: (1, N) f32.
    """
    M, K = x.shape
    _, N = w.shape
    tm = M if M <= tile_m else tile_m
    return pl.pallas_call(
        _linear_relu_kernel,
        out_shape=jax.ShapeDtypeStruct((M, N), out_dtype),
        grid=(pl.cdiv(M, tm),),
        in_specs=[pl.BlockSpec((tm, K), lambda i: (i, 0)),
                  pl.BlockSpec((K, N), lambda i: (0, 0)),   # weights resident
                  pl.BlockSpec((1, N), lambda i: (0, 0))],
        out_specs=pl.BlockSpec((tm, N), lambda i: (i, 0)),
        compiler_params=pltpu.CompilerParams(
            dimension_semantics=("parallel",),
            vmem_limit_bytes=_VMEM_LIMIT),
    )(x, w, b)


def fc_and_heads(flat, fc_w, fc_b, heads_w, heads_b, head_dims, *, tile_m=_TILE_M):
    """Fused shared FC (+ReLU) and all softmax action heads in one pallas_call."""
    B, K = flat.shape
    _, N = fc_w.shape       # 512
    _, Hp = heads_w.shape   # padded packed-head width (multiple of 128)
    tm = B if B <= tile_m else tile_m

    offs, off = [], 0
    for d in head_dims:
        offs.append((off, int(d)))
        off += int(d)

    kernel = functools.partial(_fc_heads_kernel, head_slices=tuple(offs))
    out = pl.pallas_call(
        kernel,
        out_shape=jax.ShapeDtypeStruct((B, Hp), jnp.float32),
        grid=(pl.cdiv(B, tm),),
        in_specs=[pl.BlockSpec((tm, K), lambda i: (i, 0)),
                  pl.BlockSpec((K, N), lambda i: (0, 0)),
                  pl.BlockSpec((1, N), lambda i: (0, 0)),
                  pl.BlockSpec((N, Hp), lambda i: (0, 0)),
                  pl.BlockSpec((1, Hp), lambda i: (0, 0))],
        out_specs=pl.BlockSpec((tm, Hp), lambda i: (i, 0)),
        compiler_params=pltpu.CompilerParams(
            dimension_semantics=("parallel",),
            vmem_limit_bytes=_VMEM_LIMIT),
    )(flat, fc_w, fc_b, heads_w, heads_b)
    return [out[:, o:o + d] for (o, d) in offs]


# ------------------------------ conv glue (XLA) ------------------------------

def conv2d_relu_nhwc(x, w_mat, b_pad, *, k, stride, out_ch):
    """NHWC conv + ReLU = patch extraction (XLA) + Pallas GEMM kernel.

    x: (B, H, W, C) bf16; w_mat: (C*k*k, Npad) bf16 (Npad = round_up(out_ch,128),
    extra columns zero); b_pad: (1, Npad) f32. Returns (B, OH, OW, out_ch) bf16.
    """
    B = x.shape[0]
    patches = jax.lax.conv_general_dilated_patches(
        x, filter_shape=(k, k), window_strides=(stride, stride),
        padding="VALID", dimension_numbers=("NHWC", "HWIO", "NHWC"))
    # patches: (B, OH, OW, C*k*k), feature order (c, kh, kw) == torch reshape(O,-1)
    OH, OW, K = patches.shape[1], patches.shape[2], patches.shape[3]
    out = linear_relu(patches.reshape(B * OH * OW, K), w_mat, b_pad,
                      out_dtype=COMPUTE_DTYPE)            # (B*OH*OW, Npad)
    return out[:, :out_ch].reshape(B, OH, OW, out_ch)


# ------------------------------- parameters ---------------------------------

def init_params(key, input_dims, action_dims):
    """Torch-layout parameters (same shapes/init style as the nn.Module)."""
    C, H, W = input_dims
    assert C == 12, "module hard-codes 12 input channels"
    ks = jax.random.split(key, 10)

    def u(k, shape, fan_in):
        bound = 1.0 / jnp.sqrt(fan_in)
        return jax.random.uniform(k, shape, jnp.float32, -bound, bound)

    params = {}
    params["c1_w"] = u(ks[0], (32, 12, 8, 8), 12 * 8 * 8)
    params["c1_b"] = u(ks[1], (32,), 12 * 8 * 8)
    params["c2_w"] = u(ks[2], (64, 32, 4, 4), 32 * 4 * 4)
    params["c2_b"] = u(ks[3], (64,), 32 * 4 * 4)
    params["c3_w"] = u(ks[4], (64, 64, 3, 3), 64 * 3 * 3)
    params["c3_b"] = u(ks[5], (64,), 64 * 3 * 3)

    h1, w1 = (H - 8) // 4 + 1, (W - 8) // 4 + 1
    h2, w2 = (h1 - 4) // 2 + 1, (w1 - 4) // 2 + 1
    h3, w3 = h2 - 3 + 1, w2 - 3 + 1
    fc_in = 64 * h3 * w3
    params["fc_input_dims"] = fc_in

    params["fc_w"] = u(ks[6], (fc_in, 512), fc_in)
    params["fc_b"] = u(ks[7], (512,), fc_in)

    head_keys = jax.random.split(ks[8], 2 * len(action_dims))
    params["heads"] = []
    for i, dim in enumerate(action_dims):
        hw = u(head_keys[2 * i], (512, dim), 512)
        hb = u(head_keys[2 * i + 1], (dim,), 512)
        params["heads"].append((hw, hb))
    return params


def prepare_params(params, action_dims):
    """One-time layout plumbing: matrix-ize convs, pad to 128 lanes, pack heads, cast bf16."""
    def conv_mat(w, b):
        O, C, k, _ = w.shape
        K = C * k * k
        Np = _round_up(O, 128)
        wm = jnp.pad(w.reshape(O, K).T, ((0, 0), (0, Np - O))).astype(COMPUTE_DTYPE)
        bp = jnp.pad(b, (0, Np - O)).reshape(1, Np).astype(jnp.float32)
        return wm, bp

    p = {}
    p["c1_w"], p["c1_b"] = conv_mat(params["c1_w"], params["c1_b"])
    p["c2_w"], p["c2_b"] = conv_mat(params["c2_w"], params["c2_b"])
    p["c3_w"], p["c3_b"] = conv_mat(params["c3_w"], params["c3_b"])
    p["fc_w"] = params["fc_w"].astype(COMPUTE_DTYPE)
    p["fc_b"] = params["fc_b"].reshape(1, -1).astype(jnp.float32)

    total = int(sum(action_dims))
    Hp = _round_up(total, 128)
    hw = jnp.concatenate([w for (w, _) in params["heads"]], axis=1)   # (512, total)
    hb = jnp.concatenate([b for (_, b) in params["heads"]], axis=0)   # (total,)
    p["h_w"] = jnp.pad(hw, ((0, 0), (0, Hp - total))).astype(COMPUTE_DTYPE)
    p["h_b"] = jnp.pad(hb, (0, Hp - total)).reshape(1, Hp).astype(jnp.float32)
    return p


# ------------------------------- forward pass --------------------------------

def actor_forward(prepared, state, *, head_dims):
    """state: (B, 12, H, W) NCHW f32 -> list of per-head softmax probs (f32)."""
    x = jnp.transpose(state, (0, 2, 3, 1)).astype(COMPUTE_DTYPE)   # NHWC once
    x = conv2d_relu_nhwc(x, prepared["c1_w"], prepared["c1_b"], k=8, stride=4, out_ch=32)
    x = conv2d_relu_nhwc(x, prepared["c2_w"], prepared["c2_b"], k=4, stride=2, out_ch=64)
    x = conv2d_relu_nhwc(x, prepared["c3_w"], prepared["c3_b"], k=3, stride=1, out_ch=64)
    B = x.shape[0]
    # torch flattens NCHW: reorder once NHWC -> NCHW, then view(B, -1)
    flat = jnp.transpose(x, (0, 3, 1, 2)).reshape(B, -1)
    return fc_and_heads(flat, prepared["fc_w"], prepared["fc_b"],
                        prepared["h_w"], prepared["h_b"], head_dims)


# --------------------------- pure-JAX f32 reference --------------------------

def reference_forward(params, state):
    x = state
    for (w, b, s) in ((params["c1_w"], params["c1_b"], 4),
                      (params["c2_w"], params["c2_b"], 2),
                      (params["c3_w"], params["c3_b"], 1)):
        x = jax.lax.conv_general_dilated(
            x, w, (s, s), "VALID", dimension_numbers=("NCHW", "OIHW", "NCHW"))
        x = jnp.maximum(x + b.reshape(1, -1, 1, 1), 0.0)
    flat = x.reshape(x.shape[0], -1)
    shared = jnp.maximum(flat @ params["fc_w"] + params["fc_b"], 0.0)
    return [jax.nn.softmax(shared @ hw + hb, axis=-1) for (hw, hb) in params["heads"]]


# ----------------------------------- main ------------------------------------

if __name__ == "__main__":
    key = jax.random.PRNGKey(0)
    k_param, k_state = jax.random.split(key)

    # H=W=36 gives conv spatial 36 -> 8 -> 3 -> 1, so fc_input_dims = 64.
    input_dims = (12, 36, 36)
    action_dims = (3, 3, 2)
    batch = 2

    params = init_params(k_param, input_dims, action_dims)
    prepared = prepare_params(params, action_dims)
    state = jax.random.uniform(k_state, (batch,) + input_dims, jnp.float32)

    fwd = jax.jit(functools.partial(actor_forward, head_dims=action_dims))
    probs = fwd(prepared, state)
    probs = [jax.block_until_ready(p) for p in probs]

    # sanity: each head is a proper distribution over its action dim
    for p, dim in zip(probs, action_dims):
        assert p.shape == (batch, dim)
        assert jnp.allclose(jnp.sum(p, axis=-1), 1.0, atol=1e-4)

    # loose agreement with a pure-JAX f32 reference (bf16 MXU inputs -> relaxed tol)
    ref = reference_forward(params, state)
    for p, r in zip(probs, ref):
        assert float(jnp.max(jnp.abs(p - r.astype(jnp.float32)))) < 5e-2

    print("KERNEL_OK")
</pallas_src>

<mosaic_0001>
module attributes {stable_mosaic.version = 11 : i64} {
  func.func @_linear_relu_kernel(%arg0: i32, %arg1: memref<128x768xbf16, #tpu.memory_space<vmem>>, %arg2: memref<768x128xbf16, #tpu.memory_space<vmem>>, %arg3: memref<1x128xf32, #tpu.memory_space<vmem>>, %arg4: memref<128x128xbf16, #tpu.memory_space<vmem>>) attributes {dimension_semantics = [#tpu.dimension_semantics<parallel>], iteration_bounds = array<i64: 1>, scalar_prefetch = 0 : i64, scratch_operands = 0 : i64, tpu.core_type = #tpu.core_type<tc>, window_params = [{transform_indices = @transform_0, window_bounds = array<i64: 128, 768>}, {pipeline_mode = #tpu.pipeline_mode<synchronous>, transform_indices = @transform_1, window_bounds = array<i64: 768, 128>}, {pipeline_mode = #tpu.pipeline_mode<synchronous>, transform_indices = @transform_2, window_bounds = array<i64: 1, 128>}, {transform_indices = @transform_3, window_bounds = array<i64: 128, 128>}]} {
    %c0 = arith.constant 0 : index
    %c0_0 = arith.constant 0 : index
    %0 = vector.load %arg1[%c0, %c0_0] : memref<128x768xbf16, #tpu.memory_space<vmem>>, vector<128x768xbf16>
    %c0_1 = arith.constant 0 : index
    %c0_2 = arith.constant 0 : index
    %1 = vector.load %arg2[%c0_1, %c0_2] : memref<768x128xbf16, #tpu.memory_space<vmem>>, vector<768x128xbf16>
    %cst = arith.constant dense<0.000000e+00> : vector<128x128xf32>
    %2 = tpu.matmul %0, %1, %cst {dimension_numbers = #tpu.dot_dimension_numbers<[1], [0], [0], [1], [0, 0, 1, 1], [], []>} : vector<128x768xbf16>, vector<768x128xbf16>, vector<128x128xf32> -> vector<128x128xf32>
    %c0_3 = arith.constant 0 : index
    %c0_4 = arith.constant 0 : index
    %3 = vector.load %arg3[%c0_3, %c0_4] : memref<1x128xf32, #tpu.memory_space<vmem>>, vector<1x128xf32>
    %4 = vector.broadcast %3 : vector<1x128xf32> to vector<128x128xf32>
    %5 = arith.addf %2, %4 : vector<128x128xf32>
    %cst_5 = arith.constant 0.000000e+00 : f32
    %6 = vector.broadcast %cst_5 : f32 to vector<128x128xf32>
    %7 = arith.maximumf %5, %6 : vector<128x128xf32>
    %8 = arith.truncf %7 : vector<128x128xf32> to vector<128x128xbf16>
    %c0_6 = arith.constant 0 : index
    %c0_7 = arith.constant 0 : index
    %9 = vector.load %arg4[%c0_6, %c0_7] : memref<128x128xbf16, #tpu.memory_space<vmem>>, vector<128x128xbf16>
    tpu.vector_store %arg4[%c0_6, %c0_7], %8 {strides = array<i32>} : memref<128x128xbf16, #tpu.memory_space<vmem>>, vector<128x128xbf16>,
    return
  }
  func.func @transform_0(%arg0: i32) -> (i32, i32) {
    %c0_i32 = arith.constant 0 : i32
    %c0_i32_0 = arith.constant 0 : i32
    return %arg0, %c0_i32 : i32, i32
  }
  func.func @transform_1(%arg0: i32) -> (i32, i32) {
    %c0_i32 = arith.constant 0 : i32
    %c0_i32_0 = arith.constant 0 : i32
    %c0_i32_1 = arith.constant 0 : i32
    return %c0_i32, %c0_i32_0 : i32, i32
  }
  func.func @transform_2(%arg0: i32) -> (i32, i32) {
    %c0_i32 = arith.constant 0 : i32
    %c0_i32_0 = arith.constant 0 : i32
    %c0_i32_1 = arith.constant 0 : i32
    return %c0_i32, %c0_i32_0 : i32, i32
  }
  func.func @transform_3(%arg0: i32) -> (i32, i32) {
    %c0_i32 = arith.constant 0 : i32
    %c0_i32_0 = arith.constant 0 : i32
    return %arg0, %c0_i32 : i32, i32
  }
}

module attributes {stable_mosaic.version = 11 : i64} {
  func.func @_linear_relu_kernel(%arg0: i32, %arg1: memref<18x512xbf16, #tpu.memory_space<vmem>>, %arg2: memref<512x128xbf16, #tpu.memory_space<vmem>>, %arg3: memref<1x128xf32, #tpu.memory_space<vmem>>, %arg4: memref<18x128xbf16, #tpu.memory_space<vmem>>) attributes {dimension_semantics = [#tpu.dimension_semantics<parallel>], iteration_bounds = array<i64: 1>, scalar_prefetch = 0 : i64, scratch_operands = 0 : i64, tpu.core_type = #tpu.core_type<tc>, window_params = [{transform_indices = @transform_0, window_bounds = array<i64: 18, 512>}, {pipeline_mode = #tpu.pipeline_mode<synchronous>, transform_indices = @transform_1, window_bounds = array<i64: 512, 128>}, {pipeline_mode = #tpu.pipeline_mode<synchronous>, transform_indices = @transform_2, window_bounds = array<i64: 1, 128>}, {transform_indices = @transform_3, window_bounds = array<i64: 18, 128>}]} {
    %c0 = arith.constant 0 : index
    %c0_0 = arith.constant 0 : index
    %0 = vector.load %arg1[%c0, %c0_0] : memref<18x512xbf16, #tpu.memory_space<vmem>>, vector<18x512xbf16>
    %c0_1 = arith.constant 0 : index
    %c0_2 = arith.constant 0 : index
    %1 = vector.load %arg2[%c0_1, %c0_2] : memref<512x128xbf16, #tpu.memory_space<vmem>>, vector<512x128xbf16>
    %cst = arith.constant dense<0.000000e+00> : vector<18x128xf32>
    %2 = tpu.matmul %0, %1, %cst {dimension_numbers = #tpu.dot_dimension_numbers<[1], [0], [0], [1], [0, 0, 1, 1], [], []>} : vector<18x512xbf16>, vector<512x128xbf16>, vector<18x128xf32> -> vector<18x128xf32>
    %c0_3 = arith.constant 0 : index
    %c0_4 = arith.constant 0 : index
    %3 = vector.load %arg3[%c0_3, %c0_4] : memref<1x128xf32, #tpu.memory_space<vmem>>, vector<1x128xf32>
    %4 = vector.broadcast %3 : vector<1x128xf32> to vector<18x128xf32>
    %5 = arith.addf %2, %4 : vector<18x128xf32>
    %cst_5 = arith.constant 0.000000e+00 : f32
    %6 = vector.broadcast %cst_5 : f32 to vector<18x128xf32>
    %7 = arith.maximumf %5, %6 : vector<18x128xf32>
    %8 = arith.truncf %7 : vector<18x128xf32> to vector<18x128xbf16>
    %c0_6 = arith.constant 0 : index
    %c0_7 = arith.constant 0 : index
    %9 = vector.load %arg4[%c0_6, %c0_7] : memref<18x128xbf16, #tpu.memory_space<vmem>>, vector<18x128xbf16>
    tpu.vector_store %arg4[%c0_6, %c0_7], %8 {strides = array<i32>} : memref<18x128xbf16, #tpu.memory_space<vmem>>, vector<18x128xbf16>,
    return
  }
  func.func @transform_0(%arg0: i32) -> (i32, i32) {
    %c0_i32 = arith.constant 0 : i32
    %c0_i32_0 = arith.constant 0 : i32
    return %arg0, %c0_i32 : i32, i32
  }
  func.func @transform_1(%arg0: i32) -> (i32, i32) {
    %c0_i32 = arith.constant 0 : i32
    %c0_i32_0 = arith.constant 0 : i32
    %c0_i32_1 = arith.constant 0 : i32
    return %c0_i32, %c0_i32_0 : i32, i32
  }
  func.func @transform_2(%arg0: i32) -> (i32, i32) {
    %c0_i32 = arith.constant 0 : i32
    %c0_i32_0 = arith.constant 0 : i32
    %c0_i32_1 = arith.constant 0 : i32
    return %c0_i32, %c0_i32_0 : i32, i32
  }
  func.func @transform_3(%arg0: i32) -> (i32, i32) {
    %c0_i32 = arith.constant 0 : i32
    %c0_i32_0 = arith.constant 0 : i32
    return %arg0, %c0_i32 : i32, i32
  }
}

module attributes {stable_mosaic.version = 11 : i64} {
  func.func @_linear_relu_kernel(%arg0: i32, %arg1: memref<2x576xbf16, #tpu.memory_space<vmem>>, %arg2: memref<576x128xbf16, #tpu.memory_space<vmem>>, %arg3: memref<1x128xf32, #tpu.memory_space<vmem>>, %arg4: memref<2x128xbf16, #tpu.memory_space<vmem>>) attributes {dimension_semantics = [#tpu.dimension_semantics<parallel>], iteration_bounds = array<i64: 1>, scalar_prefetch = 0 : i64, scratch_operands = 0 : i64, tpu.core_type = #tpu.core_type<tc>, window_params = [{transform_indices = @transform_0, window_bounds = array<i64: 2, 576>}, {pipeline_mode = #tpu.pipeline_mode<synchronous>, transform_indices = @transform_1, window_bounds = array<i64: 576, 128>}, {pipeline_mode = #tpu.pipeline_mode<synchronous>, transform_indices = @transform_2, window_bounds = array<i64: 1, 128>}, {transform_indices = @transform_3, window_bounds = array<i64: 2, 128>}]} {
    %c0 = arith.constant 0 : index
    %c0_0 = arith.constant 0 : index
    %0 = vector.load %arg1[%c0, %c0_0] : memref<2x576xbf16, #tpu.memory_space<vmem>>, vector<2x576xbf16>
    %c0_1 = arith.constant 0 : index
    %c0_2 = arith.constant 0 : index
    %1 = vector.load %arg2[%c0_1, %c0_2] : memref<576x128xbf16, #tpu.memory_space<vmem>>, vector<576x128xbf16>
    %cst = arith.constant dense<0.000000e+00> : vector<2x128xf32>
    %2 = tpu.matmul %0, %1, %cst {dimension_numbers = #tpu.dot_dimension_numbers<[1], [0], [0], [1], [0, 0, 1, 1], [], []>} : vector<2x576xbf16>, vector<576x128xbf16>, vector<2x128xf32> -> vector<2x128xf32>
    %c0_3 = arith.constant 0 : index
    %c0_4 = arith.constant 0 : index
    %3 = vector.load %arg3[%c0_3, %c0_4] : memref<1x128xf32, #tpu.memory_space<vmem>>, vector<1x128xf32>
    %4 = vector.broadcast %3 : vector<1x128xf32> to vector<2x128xf32>
    %5 = arith.addf %2, %4 : vector<2x128xf32>
    %cst_5 = arith.constant 0.000000e+00 : f32
    %6 = vector.broadcast %cst_5 : f32 to vector<2x128xf32>
    %7 = arith.maximumf %5, %6 : vector<2x128xf32>
    %8 = arith.truncf %7 : vector<2x128xf32> to vector<2x128xbf16>
    %c0_6 = arith.constant 0 : index
    %c0_7 = arith.constant 0 : index
    %9 = vector.load %arg4[%c0_6, %c0_7] : memref<2x128xbf16, #tpu.memory_space<vmem>>, vector<2x128xbf16>
    tpu.vector_store %arg4[%c0_6, %c0_7], %8 {strides = array<i32>} : memref<2x128xbf16, #tpu.memory_space<vmem>>, vector<2x128xbf16>,
    return
  }
  func.func @transform_0(%arg0: i32) -> (i32, i32) {
    %c0_i32 = arith.constant 0 : i32
    %c0_i32_0 = arith.constant 0 : i32
    return %arg0, %c0_i32 : i32, i32
  }
  func.func @transform_1(%arg0: i32) -> (i32, i32) {
    %c0_i32 = arith.constant 0 : i32
    %c0_i32_0 = arith.constant 0 : i32
    %c0_i32_1 = arith.constant 0 : i32
    return %c0_i32, %c0_i32_0 : i32, i32
  }
  func.func @transform_2(%arg0: i32) -> (i32, i32) {
    %c0_i32 = arith.constant 0 : i32
    %c0_i32_0 = arith.constant 0 : i32
    %c0_i32_1 = arith.constant 0 : i32
    return %c0_i32, %c0_i32_0 : i32, i32
  }
  func.func @transform_3(%arg0: i32) -> (i32, i32) {
    %c0_i32 = arith.constant 0 : i32
    %c0_i32_0 = arith.constant 0 : i32
    return %arg0, %c0_i32 : i32, i32
  }
}

module attributes {stable_mosaic.version = 11 : i64} {
  func.func @_fc_heads_kernel(%arg0: i32, %arg1: memref<2x64xbf16, #tpu.memory_space<vmem>>, %arg2: memref<64x512xbf16, #tpu.memory_space<vmem>>, %arg3: memref<1x512xf32, #tpu.memory_space<vmem>>, %arg4: memref<512x128xbf16, #tpu.memory_space<vmem>>, %arg5: memref<1x128xf32, #tpu.memory_space<vmem>>, %arg6: memref<2x128xf32, #tpu.memory_space<vmem>>) attributes {dimension_semantics = [#tpu.dimension_semantics<parallel>], iteration_bounds = array<i64: 1>, scalar_prefetch = 0 : i64, scratch_operands = 0 : i64, tpu.core_type = #tpu.core_type<tc>, window_params = [{transform_indices = @transform_0, window_bounds = array<i64: 2, 64>}, {pipeline_mode = #tpu.pipeline_mode<synchronous>, transform_indices = @transform_1, window_bounds = array<i64: 64, 512>}, {pipeline_mode = #tpu.pipeline_mode<synchronous>, transform_indices = @transform_2, window_bounds = array<i64: 1, 512>}, {pipeline_mode = #tpu.pipeline_mode<synchronous>, transform_indices = @transform_3, window_bounds = array<i64: 512, 128>}, {pipeline_mode = #tpu.pipeline_mode<synchronous>, transform_indices = @transform_4, window_bounds = array<i64: 1, 128>}, {transform_indices = @transform_5, window_bounds = array<i64: 2, 128>}]} {
    %c0 = arith.constant 0 : index
    %c0_0 = arith.constant 0 : index
    %0 = vector.load %arg1[%c0, %c0_0] : memref<2x64xbf16, #tpu.memory_space<vmem>>, vector<2x64xbf16>
    %c0_1 = arith.constant 0 : index
    %c0_2 = arith.constant 0 : index
    %1 = vector.load %arg2[%c0_1, %c0_2] : memref<64x512xbf16, #tpu.memory_space<vmem>>, vector<64x512xbf16>
    %cst = arith.constant dense<0.000000e+00> : vector<2x512xf32>
    %2 = tpu.matmul %0, %1, %cst {dimension_numbers = #tpu.dot_dimension_numbers<[1], [0], [0], [1], [0, 0, 1, 1], [], []>} : vector<2x64xbf16>, vector<64x512xbf16>, vector<2x512xf32> -> vector<2x512xf32>
    %c0_3 = arith.constant 0 : index
    %c0_4 = arith.constant 0 : index
    %3 = vector.load %arg3[%c0_3, %c0_4] : memref<1x512xf32, #tpu.memory_space<vmem>>, vector<1x512xf32>
    %4 = vector.broadcast %3 : vector<1x512xf32> to vector<2x512xf32>
    %5 = arith.addf %2, %4 : vector<2x512xf32>
    %cst_5 = arith.constant 0.000000e+00 : f32
    %6 = vector.broadcast %cst_5 : f32 to vector<2x512xf32>
    %7 = arith.maximumf %5, %6 : vector<2x512xf32>
    %8 = arith.truncf %7 : vector<2x512xf32> to vector<2x512xbf16>
    %c0_6 = arith.constant 0 : index
    %c0_7 = arith.constant 0 : index
    %9 = vector.load %arg4[%c0_6, %c0_7] : memref<512x128xbf16, #tpu.memory_space<vmem>>, vector<512x128xbf16>
    %cst_8 = arith.constant dense<0.000000e+00> : vector<2x128xf32>
    %10 = tpu.matmul %8, %9, %cst_8 {dimension_numbers = #tpu.dot_dimension_numbers<[1], [0], [0], [1], [0, 0, 1, 1], [], []>} : vector<2x512xbf16>, vector<512x128xbf16>, vector<2x128xf32> -> vector<2x128xf32>
    %c0_9 = arith.constant 0 : index
    %c0_10 = arith.constant 0 : index
    %11 = vector.load %arg5[%c0_9, %c0_10] : memref<1x128xf32, #tpu.memory_space<vmem>>, vector<1x128xf32>
    %12 = vector.broadcast %11 : vector<1x128xf32> to vector<2x128xf32>
    %13 = arith.addf %10, %12 : vector<2x128xf32>
    %14 = tpu.iota {dimensions = array<i32: 1>} : vector<2x128xi32>
    %cst_11 = arith.constant 0.000000e+00 : f32
    %15 = vector.broadcast %cst_11 : f32 to vector<2x128xf32>
    %c0_i32 = arith.constant 0 : i32
    %16 = vector.broadcast %c0_i32 : i32 to vector<2x128xi32>
    %17 = arith.cmpi sge, %14, %16 : vector<2x128xi32>
    %c3_i32 = arith.constant 3 : i32
    %18 = vector.broadcast %c3_i32 : i32 to vector<2x128xi32>
    %19 = arith.cmpi slt, %14, %18 : vector<2x128xi32>
    %20 = arith.andi %17, %19 : vector<2x128xi1>
    %cst_12 = arith.constant 0xFF800000 : f32
    %21 = vector.broadcast %cst_12 : f32 to vector<2x128xf32>
    %22 = arith.select %20, %13, %21 : vector<2x128xi1>, vector<2x128xf32>
    %cst_13 = arith.constant dense<0xFF800000> : vector<2xf32>
    %23 = vector.multi_reduction <maximumf>, %22, %cst_13 [1] : vector<2x128xf32> to vector<2xf32>
    %24 = vector.shape_cast %23 : vector<2xf32> to vector<2x1xf32>
    %25 = vector.broadcast %24 : vector<2x1xf32> to vector<2x128xf32>
    %26 = arith.subf %22, %25 : vector<2x128xf32>
    %27 = math.exp %26 : vector<2x128xf32>
    %cst_14 = arith.constant 0.000000e+00 : f32
    %28 = vector.broadcast %cst_14 : f32 to vector<2x128xf32>
    %29 = arith.select %20, %27, %28 : vector<2x128xi1>, vector<2x128xf32>
    %cst_15 = arith.constant dense<0.000000e+00> : vector<2xf32>
    %30 = vector.multi_reduction <add>, %29, %cst_15 [1] : vector<2x128xf32> to vector<2xf32>
    %31 = vector.shape_cast %30 : vector<2xf32> to vector<2x1xf32>
    %32 = tpu.reciprocal %31 {approx = true} : vector<2x1xf32> -> vector<2x1xf32>
    %33 = arith.mulf %31, %32 : vector<2x1xf32>
    %cst_16 = arith.constant 2.000000e+00 : f32
    %34 = vector.broadcast %cst_16 : f32 to vector<2x1xf32>
    %35 = arith.subf %34, %33 : vector<2x1xf32>
    %36 = arith.mulf %32, %35 : vector<2x1xf32>
    %37 = vector.broadcast %36 : vector<2x1xf32> to vector<2x128xf32>
    %38 = arith.mulf %29, %37 : vector<2x128xf32>
    %39 = arith.addf %15, %38 : vector<2x128xf32>
    %c3_i32_17 = arith.constant 3 : i32
    %40 = vector.broadcast %c3_i32_17 : i32 to vector<2x128xi32>
    %41 = arith.cmpi sge, %14, %40 : vector<2x128xi32>
    %c6_i32 = arith.constant 6 : i32
    %42 = vector.broadcast %c6_i32 : i32 to vector<2x128xi32>
    %43 = arith.cmpi slt, %14, %42 : vector<2x128xi32>
    %44 = arith.andi %41, %43 : vector<2x128xi1>
    %cst_18 = arith.constant 0xFF800000 : f32
    %45 = vector.broadcast %cst_18 : f32 to vector<2x128xf32>
    %46 = arith.select %44, %13, %45 : vector<2x128xi1>, vector<2x128xf32>
    %cst_19 = arith.constant dense<0xFF800000> : vector<2xf32>
    %47 = vector.multi_reduction <maximumf>, %46, %cst_19 [1] : vector<2x128xf32> to vector<2xf32>
    %48 = vector.shape_cast %47 : vector<2xf32> to vector<2x1xf32>
    %49 = vector.broadcast %48 : vector<2x1xf32> to vector<2x128xf32>
    %50 = arith.subf %46, %49 : vector<2x128xf32>
    %51 = math.exp %50 : vector<2x128xf32>
    %cst_20 = arith.constant 0.000000e+00 : f32
    %52 = vector.broadcast %cst_20 : f32 to vector<2x128xf32>
    %53 = arith.select %44, %51, %52 : vector<2x128xi1>, vector<2x128xf32>
    %cst_21 = arith.constant dense<0.000000e+00> : vector<2xf32>
    %54 = vector.multi_reduction <add>, %53, %cst_21 [1] : vector<2x128xf32> to vector<2xf32>
    %55 = vector.shape_cast %54 : vector<2xf32> to vector<2x1xf32>
    %56 = tpu.reciprocal %55 {approx = true} : vector<2x1xf32> -> vector<2x1xf32>
    %57 = arith.mulf %55, %56 : vector<2x1xf32>
    %cst_22 = arith.constant 2.000000e+00 : f32
    %58 = vector.broadcast %cst_22 : f32 to vector<2x1xf32>
    %59 = arith.subf %58, %57 : vector<2x1xf32>
    %60 = arith.mulf %56, %59 : vector<2x1xf32>
    %61 = vector.broadcast %60 : vector<2x1xf32> to vector<2x128xf32>
    %62 = arith.mulf %53, %61 : vector<2x128xf32>
    %63 = arith.addf %39, %62 : vector<2x128xf32>
    %c6_i32_23 = arith.constant 6 : i32
    %64 = vector.broadcast %c6_i32_23 : i32 to vector<2x128xi32>
    %65 = arith.cmpi sge, %14, %64 : vector<2x128xi32>
    %c8_i32 = arith.constant 8 : i32
    %66 = vector.broadcast %c8_i32 : i32 to vector<2x128xi32>
    %67 = arith.cmpi slt, %14, %66 : vector<2x128xi32>
    %68 = arith.andi %65, %67 : vector<2x128xi1>
    %cst_24 = arith.constant 0xFF800000 : f32
    %69 = vector.broadcast %cst_24 : f32 to vector<2x128xf32>
    %70 = arith.select %68, %13, %69 : vector<2x128xi1>, vector<2x128xf32>
    %cst_25 = arith.constant dense<0xFF800000> : vector<2xf32>
    %71 = vector.multi_reduction <maximumf>, %70, %cst_25 [1] : vector<2x128xf32> to vector<2xf32>
    %72 = vector.shape_cast %71 : vector<2xf32> to vector<2x1xf32>
    %73 = vector.broadcast %72 : vector<2x1xf32> to vector<2x128xf32>
    %74 = arith.subf %70, %73 : vector<2x128xf32>
    %75 = math.exp %74 : vector<2x128xf32>
    %cst_26 = arith.constant 0.000000e+00 : f32
    %76 = vector.broadcast %cst_26 : f32 to vector<2x128xf32>
    %77 = arith.select %68, %75, %76 : vector<2x128xi1>, vector<2x128xf32>
    %cst_27 = arith.constant dense<0.000000e+00> : vector<2xf32>
    %78 = vector.multi_reduction <add>, %77, %cst_27 [1] : vector<2x128xf32> to vector<2xf32>
    %79 = vector.shape_cast %78 : vector<2xf32> to vector<2x1xf32>
    %80 = tpu.reciprocal %79 {approx = true} : vector<2x1xf32> -> vector<2x1xf32>
    %81 = arith.mulf %79, %80 : vector<2x1xf32>
    %cst_28 = arith.constant 2.000000e+00 : f32
    %82 = vector.broadcast %cst_28 : f32 to vector<2x1xf32>
    %83 = arith.subf %82, %81 : vector<2x1xf32>
    %84 = arith.mulf %80, %83 : vector<2x1xf32>
    %85 = vector.broadcast %84 : vector<2x1xf32> to vector<2x128xf32>
    %86 = arith.mulf %77, %85 : vector<2x128xf32>
    %87 = arith.addf %63, %86 : vector<2x128xf32>
    %c0_29 = arith.constant 0 : index
    %c0_30 = arith.constant 0 : index
    %88 = vector.load %arg6[%c0_29, %c0_30] : memref<2x128xf32, #tpu.memory_space<vmem>>, vector<2x128xf32>
    tpu.vector_store %arg6[%c0_29, %c0_30], %87 {strides = array<i32>} : memref<2x128xf32, #tpu.memory_space<vmem>>, vector<2x128xf32>,
    return
  }
  func.func @transform_0(%arg0: i32) -> (i32, i32) {
    %c0_i32 = arith.constant 0 : i32
    %c0_i32_0 = arith.constant 0 : i32
    return %arg0, %c0_i32 : i32, i32
  }
  func.func @transform_1(%arg0: i32) -> (i32, i32) {
    %c0_i32 = arith.constant 0 : i32
    %c0_i32_0 = arith.constant 0 : i32
    %c0_i32_1 = arith.constant 0 : i32
    return %c0_i32, %c0_i32_0 : i32, i32
  }
  func.func @transform_2(%arg0: i32) -> (i32, i32) {
    %c0_i32 = arith.constant 0 : i32
    %c0_i32_0 = arith.constant 0 : i32
    %c0_i32_1 = arith.constant 0 : i32
    return %c0_i32, %c0_i32_0 : i32, i32
  }
  func.func @transform_3(%arg0: i32) -> (i32, i32) {
    %c0_i32 = arith.constant 0 : i32
    %c0_i32_0 = arith.constant 0 : i32
    %c0_i32_1 = arith.constant 0 : i32
    return %c0_i32, %c0_i32_0 : i32, i32
  }
  func.func @transform_4(%arg0: i32) -> (i32, i32) {
    %c0_i32 = arith.constant 0 : i32
    %c0_i32_0 = arith.constant 0 : i32
    %c0_i32_1 = arith.constant 0 : i32
    return %c0_i32, %c0_i32_0 : i32, i32
  }
  func.func @transform_5(%arg0: i32) -> (i32, i32) {
    %c0_i32 = arith.constant 0 : i32
    %c0_i32_0 = arith.constant 0 : i32
    return %arg0, %c0_i32 : i32, i32
  }
}

</mosaic_0001>

<llo_original>
// kernel: actor_forward.4
$region0: #{actor_forward.4}
  #allocation0 [shape = 'u32[]', space=smem, size = 0x4, offset = 0x4, fixed_abs, tag = 'smem constant byte address 0x4 - core index']
  #allocation1 [shape = 'u32[72,128]{1,0:T(1,128)}', space=vmem, size = 0x9000, scoped, tag = 'internal scratch']
  %s0 = inlined_call_operand.vmem [shape: bf16[128,768], index: 0, kind: input, shape index: {}]
  %s1 = inlined_call_operand.vmem [shape: bf16[768,128], index: 1, kind: input, shape index: {}]
  %s2 = inlined_call_operand.vmem [shape: f32[1,128], index: 2, kind: input, shape index: {}]
  %s3 = inlined_call_operand.vmem [shape: bf16[128,128], index: 3, kind: output, shape index: {}]
  %s4 = sld [smem:[#allocation0]]
  $region22: #{actor_forward.4} parent=0
    _
  %s6 = ssub.s32 1, %s4
  %s7 = scalar_select 0, %s6, %s4
  // Predicated region
  $region2: #{actor_forward.4} parent=0 // pred_check
    _
  $region3: #{actor_forward.4} parent=0 // pred_check_branch
    %9 = sbr.rel (0) target = $region5
  $region4: #{actor_forward.4} parent=0 // pred_region
    _
  $region5: #{actor_forward.4} parent=0 // pred_fallthru
    _
  // Predicated region
  $region6: #{actor_forward.4} parent=0 // pred_check
    _
  $region7: #{actor_forward.4} parent=0 // pred_check_branch
    %11 = sbr.rel (0) target = $region9
  $region8: #{actor_forward.4} parent=0 // pred_region
    _
  $region9: #{actor_forward.4} parent=0 // pred_fallthru
    _
  // Predicated region
  $region10: #{actor_forward.4} parent=0 // pred_check
    _
  $region11: #{actor_forward.4} parent=0 // pred_check_branch
    %13 = sbr.rel (0) target = $region13
  $region12: #{actor_forward.4} parent=0 // pred_region
    _
  $region13: #{actor_forward.4} parent=0 // pred_fallthru
    _
  %v14 = vld [vmem:[%s0] sm:$0xff]
  %v15 = vld [vmem:[%s0 + $0x8] sm:$0xff]
  %v16 = vld [vmem:[%s0 + $0x10] sm:$0xff]
  %v17 = vld [vmem:[%s0 + $0x18] sm:$0xff]
  %v18 = vld [vmem:[%s0 + $0x20] sm:$0xff]
  %v19 = vld [vmem:[%s0 + $0x28] sm:$0xff]
  %v20 = vld [vmem:[%s0 + $0x30] sm:$0xff]
  %v21 = vld [vmem:[%s0 + $0x38] sm:$0xff]
  %v22 = vld [vmem:[%s0 + $0x40] sm:$0xff]
  %v23 = vld [vmem:[%s0 + $0x48] sm:$0xff]
  %v24 = vld [vmem:[%s0 + $0x50] sm:$0xff]
  %v25 = vld [vmem:[%s0 + $0x58] sm:$0xff]
  %v26 = vld [vmem:[%s0 + $0x60] sm:$0xff]
  %v27 = vld [vmem:[%s0 + $0x68] sm:$0xff]
  %v28 = vld [vmem:[%s0 + $0x70] sm:$0xff]
  %v29 = vld [vmem:[%s0 + $0x78] sm:$0xff]
  %v30 = vld [vmem:[%s0 + $0x80] sm:$0xff]
  %v31 = vld [vmem:[%s0 + $0x88] sm:$0xff]
  %v32 = vld [vmem:[%s0 + $0x90] sm:$0xff]
  %v33 = vld [vmem:[%s0 + $0x98] sm:$0xff]
  %v34 = vld [vmem:[%s0 + $0xa0] sm:$0xff]
  %v35 = vld [vmem:[%s0 + $0xa8] sm:$0xff]
  %v36 = vld [vmem:[%s0 + $0xb0] sm:$0xff]
  %v37 = vld [vmem:[%s0 + $0xb8] sm:$0xff]
  %v38 = vld [vmem:[%s0 + $0xc0] sm:$0xff]
  %v39 = vld [vmem:[%s0 + $0xc8] sm:$0xff]
  %v40 = vld [vmem:[%s0 + $0xd0] sm:$0xff]
  %v41 = vld [vmem:[%s0 + $0xd8] sm:$0xff]
  %v42 = vld [vmem:[%s0 + $0xe0] sm:$0xff]
  %v43 = vld [vmem:[%s0 + $0xe8] sm:$0xff]
  %v44 = vld [vmem:[%s0 + $0xf0] sm:$0xff]
  %v45 = vld [vmem:[%s0 + $0xf8] sm:$0xff]
  %v46 = vld [vmem:[%s0 + $0x100] sm:$0xff]
  %v47 = vld [vmem:[%s0 + $0x108] sm:$0xff]
  %v48 = vld [vmem:[%s0 + $0x110] sm:$0xff]
  %v49 = vld [vmem:[%s0 + $0x118] sm:$0xff]
  %v50 = vld [vmem:[%s0 + $0x120] sm:$0xff]
  %v51 = vld [vmem:[%s0 + $0x128] sm:$0xff]
  %v52 = vld [vmem:[%s0 + $0x130] sm:$0xff]
  %v53 = vld [vmem:[%s0 + $0x138] sm:$0xff]
  %v54 = vld [vmem:[%s0 + $0x140] sm:$0xff]
  %v55 = vld [vmem:[%s0 + $0x148] sm:$0xff]
  %v56 = vld [vmem:[%s0 + $0x150] sm:$0xff]
  %v57 = vld [vmem:[%s0 + $0x158] sm:$0xff]
  %v58 = vld [vmem:[%s0 + $0x160] sm:$0xff]
  %v59 = vld [vmem:[%s0 + $0x168] sm:$0xff]
  %v60 = vld [vmem:[%s0 + $0x170] sm:$0xff]
  %v61 = vld [vmem:[%s0 + $0x178] sm:$0xff]
  %v62 = vld [vmem:[%s1] sm:$0xf]
  %v63 = vld [vmem:[%s1 + $0x4] sm:$0xf]
  %v64 = vld [vmem:[%s1 + $0x8] sm:$0xf]
  %v65 = vld [vmem:[%s1 + $0xc] sm:$0xf]
  %v66 = vld [vmem:[%s1 + $0x10] sm:$0xf]
  %v67 = vld [vmem:[%s1 + $0x14] sm:$0xf]
  %v68 = vld [vmem:[%s1 + $0x18] sm:$0xf]
  %v69 = vld [vmem:[%s1 + $0x1c] sm:$0xf]
  %v70 = vld [vmem:[%s1 + $0x20] sm:$0xf]
  %v71 = vld [vmem:[%s1 + $0x24] sm:$0xf]
  %v72 = vld [vmem:[%s1 + $0x28] sm:$0xf]
  %v73 = vld [vmem:[%s1 + $0x2c] sm:$0xf]
  %v74 = vld [vmem:[%s1 + $0x30] sm:$0xf]
  %v75 = vld [vmem:[%s1 + $0x34] sm:$0xf]
  %v76 = vld [vmem:[%s1 + $0x38] sm:$0xf]
  %v77 = vld [vmem:[%s1 + $0x3c] sm:$0xf]
  %v78 = vld [vmem:[%s1 + $0x40] sm:$0xf]
  %v79 = vld [vmem:[%s1 + $0x44] sm:$0xf]
  %v80 = vld [vmem:[%s1 + $0x48] sm:$0xf]
  %v81 = vld [vmem:[%s1 + $0x4c] sm:$0xf]
  %v82 = vld [vmem:[%s1 + $0x50] sm:$0xf]
  %v83 = vld [vmem:[%s1 + $0x54] sm:$0xf]
  %v84 = vld [vmem:[%s1 + $0x58] sm:$0xf]
  %v85 = vld [vmem:[%s1 + $0x5c] sm:$0xf]
  %v86 = vld [vmem:[%s1 + $0x60] sm:$0xf]
  %v87 = vld [vmem:[%s1 + $0x64] sm:$0xf]
  %v88 = vld [vmem:[%s1 + $0x68] sm:$0xf]
  %v89 = vld [vmem:[%s1 + $0x6c] sm:$0xf]
  %v90 = vld [vmem:[%s1 + $0x70] sm:$0xf]
  %v91 = vld [vmem:[%s1 + $0x74] sm:$0xf]
  %v92 = vld [vmem:[%s1 + $0x78] sm:$0xf]
  %v93 = vld [vmem:[%s1 + $0x7c] sm:$0xf]
  %v94 = vld [vmem:[%s1 + $0x80] sm:$0xf]
  %v95 = vld [vmem:[%s1 + $0x84] sm:$0xf]
  %v96 = vld [vmem:[%s1 + $0x88] sm:$0xf]
  %v97 = vld [vmem:[%s1 + $0x8c] sm:$0xf]
  %v98 = vld [vmem:[%s1 + $0x90] sm:$0xf]
  %v99 = vld [vmem:[%s1 + $0x94] sm:$0xf]
  %v100 = vld [vmem:[%s1 + $0x98] sm:$0xf]
  %v101 = vld [vmem:[%s1 + $0x9c] sm:$0xf]
  %v102 = vld [vmem:[%s1 + $0xa0] sm:$0xf]
  %v103 = vld [vmem:[%s1 + $0xa4] sm:$0xf]
  %v104 = vld [vmem:[%s1 + $0xa8] sm:$0xf]
  %v105 = vld [vmem:[%s1 + $0xac] sm:$0xf]
  %v106 = vld [vmem:[%s1 + $0xb0] sm:$0xf]
  %v107 = vld [vmem:[%s1 + $0xb4] sm:$0xf]
  %v108 = vld [vmem:[%s1 + $0xb8] sm:$0xf]
  %v109 = vld [vmem:[%s1 + $0xbc] sm:$0xf]
  %v110 = vld [vmem:[%s1 + $0xc0] sm:$0xf]
  %v111 = vld [vmem:[%s1 + $0xc4] sm:$0xf]
  %v112 = vld [vmem:[%s1 + $0xc8] sm:$0xf]
  %v113 = vld [vmem:[%s1 + $0xcc] sm:$0xf]
  %v114 = vld [vmem:[%s1 + $0xd0] sm:$0xf]
  %v115 = vld [vmem:[%s1 + $0xd4] sm:$0xf]
  %v116 = vld [vmem:[%s1 + $0xd8] sm:$0xf]
  %v117 = vld [vmem:[%s1 + $0xdc] sm:$0xf]
  %v118 = vld [vmem:[%s1 + $0xe0] sm:$0xf]
  %v119 = vld [vmem:[%s1 + $0xe4] sm:$0xf]
  %v120 = vld [vmem:[%s1 + $0xe8] sm:$0xf]
  %v121 = vld [vmem:[%s1 + $0xec] sm:$0xf]
  %v122 = vld [vmem:[%s1 + $0xf0] sm:$0xf]
  %v123 = vld [vmem:[%s1 + $0xf4] sm:$0xf]
  %v124 = vld [vmem:[%s1 + $0xf8] sm:$0xf]
  %v125 = vld [vmem:[%s1 + $0xfc] sm:$0xf]
  %v126 = vld [vmem:[%s1 + $0x100] sm:$0xf]
  %v127 = vld [vmem:[%s1 + $0x104] sm:$0xf]
  %v128 = vld [vmem:[%s1 + $0x108] sm:$0xf]
  %v129 = vld [vmem:[%s1 + $0x10c] sm:$0xf]
  %v130 = vld [vmem:[%s1 + $0x110] sm:$0xf]
  %v131 = vld [vmem:[%s1 + $0x114] sm:$0xf]
  %v132 = vld [vmem:[%s1 + $0x118] sm:$0xf]
  %v133 = vld [vmem:[%s1 + $0x11c] sm:$0xf]
  %v134 = vld [vmem:[%s1 + $0x120] sm:$0xf]
  %v135 = vld [vmem:[%s1 + $0x124] sm:$0xf]
  %v136 = vld [vmem:[%s1 + $0x128] sm:$0xf]
  %v137 = vld [vmem:[%s1 + $0x12c] sm:$0xf]
  %v138 = vld [vmem:[%s1 + $0x130] sm:$0xf]
  %v139 = vld [vmem:[%s1 + $0x134] sm:$0xf]
  %v140 = vld [vmem:[%s1 + $0x138] sm:$0xf]
  %v141 = vld [vmem:[%s1 + $0x13c] sm:$0xf]
  %v142 = vld [vmem:[%s1 + $0x140] sm:$0xf]
  %v143 = vld [vmem:[%s1 + $0x144] sm:$0xf]
  %v144 = vld [vmem:[%s1 + $0x148] sm:$0xf]
  %v145 = vld [vmem:[%s1 + $0x14c] sm:$0xf]
  %v146 = vld [vmem:[%s1 + $0x150] sm:$0xf]
  %v147 = vld [vmem:[%s1 + $0x154] sm:$0xf]
  %v148 = vld [vmem:[%s1 + $0x158] sm:$0xf]
  %v149 = vld [vmem:[%s1 + $0x15c] sm:$0xf]
  %v150 = vld [vmem:[%s1 + $0x160] sm:$0xf]
  %v151 = vld [vmem:[%s1 + $0x164] sm:$0xf]
  %v152 = vld [vmem:[%s1 + $0x168] sm:$0xf]
  %v153 = vld [vmem:[%s1 + $0x16c] sm:$0xf]
  %v154 = vld [vmem:[%s1 + $0x170] sm:$0xf]
  %v155 = vld [vmem:[%s1 + $0x174] sm:$0xf]
  %v156 = vld [vmem:[%s1 + $0x178] sm:$0xf]
  %v157 = vld [vmem:[%s1 + $0x17c] sm:$0xf]
  %v158 = vld [vmem:[%s2] sm:$0x1]
  %v160 = vperm.slane %v158, 0
  %v210 = vunpack.c.l.b16 %v14
  %v211 = vunpack.c.h.b16 %v14
  %v212 = vunpack.c.l.b16 %v15
  %v213 = vunpack.c.h.b16 %v15
  %v214 = vunpack.c.l.b16 %v16
  %v215 = vunpack.c.h.b16 %v16
  %v216 = vunpack.c.l.b16 %v17
  %v217 = vunpack.c.h.b16 %v17
  %v218 = vunpack.c.l.b16 %v18
  %v219 = vunpack.c.h.b16 %v18
  %v220 = vunpack.c.l.b16 %v19
  %v221 = vunpack.c.h.b16 %v19
  %v222 = vunpack.c.l.b16 %v20
  %v223 = vunpack.c.h.b16 %v20
  %v224 = vunpack.c.l.b16 %v21
  %v225 = vunpack.c.h.b16 %v21
  %v226 = vunpack.c.l.b16 %v22
  %v227 = vunpack.c.h.b16 %v22
  %v228 = vunpack.c.l.b16 %v23
  %v229 = vunpack.c.h.b16 %v23
  %v230 = vunpack.c.l.b16 %v24
  %v231 = vunpack.c.h.b16 %v24
  %v232 = vunpack.c.l.b16 %v25
  %v233 = vunpack.c.h.b16 %v25
  %v234 = vunpack.c.l.b16 %v26
  %v235 = vunpack.c.h.b16 %v26
  %v236 = vunpack.c.l.b16 %v27
  %v237 = vunpack.c.h.b16 %v27
  %v238 = vunpack.c.l.b16 %v28
  %v239 = vunpack.c.h.b16 %v28
  %v240 = vunpack.c.l.b16 %v29
  %v241 = vunpack.c.h.b16 %v29
  %v242 = vunpack.c.l.b16 %v30
  %v243 = vunpack.c.h.b16 %v30
  %v244 = vunpack.c.l.b16 %v31
  %v245 = vunpack.c.h.b16 %v31
  %v246 = vunpack.c.l.b16 %v32
  %v247 = vunpack.c.h.b16 %v32
  %v248 = vunpack.c.l.b16 %v33
  %v249 = vunpack.c.h.b16 %v33
  %v250 = vunpack.c.l.b16 %v34
  %v251 = vunpack.c.h.b16 %v34
  %v252 = vunpack.c.l.b16 %v35
  %v253 = vunpack.c.h.b16 %v35
  %v254 = vunpack.c.l.b16 %v36
  %v255 = vunpack.c.h.b16 %v36
  %v256 = vunpack.c.l.b16 %v37
  %v257 = vunpack.c.h.b16 %v37
  %v258 = vunpack.c.l.b16 %v38
  %v259 = vunpack.c.h.b16 %v38
  %v260 = vunpack.c.l.b16 %v39
  %v261 = vunpack.c.h.b16 %v39
  %v262 = vunpack.c.l.b16 %v40
  %v263 = vunpack.c.h.b16 %v40
  %v264 = vunpack.c.l.b16 %v41
  %v265 = vunpack.c.h.b16 %v41
  %v266 = vunpack.c.l.b16 %v42
  %v267 = vunpack.c.h.b16 %v42
  %v268 = vunpack.c.l.b16 %v43
  %v269 = vunpack.c.h.b16 %v43
  %v270 = vunpack.c.l.b16 %v44
  %v271 = vunpack.c.h.b16 %v44
  %v272 = vunpack.c.l.b16 %v45
  %v273 = vunpack.c.h.b16 %v45
  %v274 = vunpack.c.l.b16 %v46
  %v275 = vunpack.c.h.b16 %v46
  %v276 = vunpack.c.l.b16 %v47
  %v277 = vunpack.c.h.b16 %v47
  %v278 = vunpack.c.l.b16 %v48
  %v279 = vunpack.c.h.b16 %v48
  %v280 = vunpack.c.l.b16 %v49
  %v281 = vunpack.c.h.b16 %v49
  %v282 = vunpack.c.l.b16 %v50
  %v283 = vunpack.c.h.b16 %v50
  %v284 = vunpack.c.l.b16 %v51
  %v285 = vunpack.c.h.b16 %v51
  %v286 = vunpack.c.l.b16 %v52
  %v287 = vunpack.c.h.b16 %v52
  %v288 = vunpack.c.l.b16 %v53
  %v289 = vunpack.c.h.b16 %v53
  %v290 = vunpack.c.l.b16 %v54
  %v291 = vunpack.c.h.b16 %v54
  %v292 = vunpack.c.l.b16 %v55
  %v293 = vunpack.c.h.b16 %v55
  %v294 = vunpack.c.l.b16 %v56
  %v295 = vunpack.c.h.b16 %v56
  %v296 = vunpack.c.l.b16 %v57
  %v297 = vunpack.c.h.b16 %v57
  %v298 = vunpack.c.l.b16 %v58
  %v299 = vunpack.c.h.b16 %v58
  %v300 = vunpack.c.l.b16 %v59
  %v301 = vunpack.c.h.b16 %v59
  %v302 = vunpack.c.l.b16 %v60
  %v303 = vunpack.c.h.b16 %v60
  %v304 = vunpack.c.l.b16 %v61
  %v305 = vunpack.c.h.b16 %v61
  %v306 = vpack.c.b16 %v216, %v210
  %v307 = vpack.c.b16 %v217, %v211
  %v308 = vpack.c.b16 %v218, %v212
  %v309 = vpack.c.b16 %v219, %v213
  %v310 = vpack.c.b16 %v220, %v214
  %v311 = vpack.c.b16 %v221, %v215
  %v312 = vpack.c.b16 %v228, %v222
  %v313 = vpack.c.b16 %v229, %v223
  %v314 = vpack.c.b16 %v230, %v224
  %v315 = vpack.c.b16 %v231, %v225
  %v316 = vpack.c.b16 %v232, %v226
  %v317 = vpack.c.b16 %v233, %v227
  %v318 = vpack.c.b16 %v240, %v234
  %v319 = vpack.c.b16 %v241, %v235
  %v320 = vpack.c.b16 %v242, %v236
  %v321 = vpack.c.b16 %v243, %v237
  %v322 = vpack.c.b16 %v244, %v238
  %v323 = vpack.c.b16 %v245, %v239
  %v324 = vpack.c.b16 %v252, %v246
  %v325 = vpack.c.b16 %v253, %v247
  %v326 = vpack.c.b16 %v254, %v248
  %v327 = vpack.c.b16 %v255, %v249
  %v328 = vpack.c.b16 %v256, %v250
  %v329 = vpack.c.b16 %v257, %v251
  %v330 = vpack.c.b16 %v264, %v258
  %v331 = vpack.c.b16 %v265, %v259
  %v332 = vpack.c.b16 %v266, %v260
  %v333 = vpack.c.b16 %v267, %v261
  %v334 = vpack.c.b16 %v268, %v262
  %v335 = vpack.c.b16 %v269, %v263
  %v336 = vpack.c.b16 %v276, %v270
  %v337 = vpack.c.b16 %v277, %v271
  %v338 = vpack.c.b16 %v278, %v272
  %v339 = vpack.c.b16 %v279, %v273
  %v340 = vpack.c.b16 %v280, %v274
  %v341 = vpack.c.b16 %v281, %v275
  %v342 = vpack.c.b16 %v288, %v282
  %v343 = vpack.c.b16 %v289, %v283
  %v344 = vpack.c.b16 %v290, %v284
  %v345 = vpack.c.b16 %v291, %v285
  %v346 = vpack.c.b16 %v292, %v286
  %v347 = vpack.c.b16 %v293, %v287
  %v348 = vpack.c.b16 %v300, %v294
  %v349 = vpack.c.b16 %v301, %v295
  %v350 = vpack.c.b16 %v302, %v296
  %v351 = vpack.c.b16 %v303, %v297
  %v352 = vpack.c.b16 %v304, %v298
  %v353 = vpack.c.b16 %v305, %v299
  %v498 = vunpack.c.l.b16 %v62
  %v499 = vunpack.c.l.b16 %v63
  %v500 = vunpack.c.l.b16 %v64
  %v501 = vunpack.c.l.b16 %v65
  %v502 = vunpack.c.l.b16 %v66
  %v503 = vunpack.c.l.b16 %v67
  %v504 = vunpack.c.l.b16 %v68
  %v505 = vunpack.c.l.b16 %v69
  %v506 = vunpack.c.l.b16 %v70
  %v507 = vunpack.c.l.b16 %v71
  %v508 = vunpack.c.l.b16 %v72
  %v509 = vunpack.c.l.b16 %v73
  %v510 = vunpack.c.l.b16 %v74
  %v511 = vunpack.c.l.b16 %v75
  %v512 = vunpack.c.l.b16 %v76
  %v513 = vunpack.c.l.b16 %v77
  %v514 = vunpack.c.l.b16 %v78
  %v515 = vunpack.c.l.b16 %v79
  %v516 = vunpack.c.l.b16 %v80
  %v517 = vunpack.c.l.b16 %v81
  %v518 = vunpack.c.l.b16 %v82
  %v519 = vunpack.c.l.b16 %v83
  %v520 = vunpack.c.l.b16 %v84
  %v521 = vunpack.c.l.b16 %v85
  %v522 = vunpack.c.l.b16 %v86
  %v523 = vunpack.c.l.b16 %v87
  %v524 = vunpack.c.l.b16 %v88
  %v525 = vunpack.c.l.b16 %v89
  %v526 = vunpack.c.l.b16 %v90
  %v527 = vunpack.c.l.b16 %v91
  %v528 = vunpack.c.l.b16 %v92
  %v529 = vunpack.c.l.b16 %v93
  %v530 = vunpack.c.l.b16 %v94
  %v531 = vunpack.c.l.b16 %v95
  %v532 = vunpack.c.l.b16 %v96
  %v533 = vunpack.c.l.b16 %v97
  %v534 = vunpack.c.l.b16 %v98
  %v535 = vunpack.c.l.b16 %v99
  %v536 = vunpack.c.l.b16 %v100
  %v537 = vunpack.c.l.b16 %v101
  %v538 = vunpack.c.l.b16 %v102
  %v539 = vunpack.c.l.b16 %v103
  %v540 = vunpack.c.l.b16 %v104
  %v541 = vunpack.c.l.b16 %v105
  %v542 = vunpack.c.l.b16 %v106
  %v543 = vunpack.c.l.b16 %v107
  %v544 = vunpack.c.l.b16 %v108
  %v545 = vunpack.c.l.b16 %v109
  %v546 = vunpack.c.l.b16 %v110
  %v547 = vunpack.c.l.b16 %v111
  %v548 = vunpack.c.l.b16 %v112
  %v549 = vunpack.c.l.b16 %v113
  %v550 = vunpack.c.l.b16 %v114
  %v551 = vunpack.c.l.b16 %v115
  %v552 = vunpack.c.l.b16 %v116
  %v553 = vunpack.c.l.b16 %v117
  %v554 = vunpack.c.l.b16 %v118
  %v555 = vunpack.c.l.b16 %v119
  %v556 = vunpack.c.l.b16 %v120
  %v557 = vunpack.c.l.b16 %v121
  %v558 = vunpack.c.l.b16 %v122
  %v559 = vunpack.c.l.b16 %v123
  %v560 = vunpack.c.l.b16 %v124
  %v561 = vunpack.c.l.b16 %v125
  %v562 = vunpack.c.l.b16 %v126
  %v563 = vunpack.c.l.b16 %v127
  %v564 = vunpack.c.l.b16 %v128
  %v565 = vunpack.c.l.b16 %v129
  %v566 = vunpack.c.l.b16 %v130
  %v567 = vunpack.c.l.b16 %v131
  %v568 = vunpack.c.l.b16 %v132
  %v569 = vunpack.c.l.b16 %v133
  %v570 = vunpack.c.l.b16 %v134
  %v571 = vunpack.c.l.b16 %v135
  %v572 = vunpack.c.l.b16 %v136
  %v573 = vunpack.c.l.b16 %v137
  %v574 = vunpack.c.l.b16 %v138
  %v575 = vunpack.c.l.b16 %v139
  %v576 = vunpack.c.l.b16 %v140
  %v577 = vunpack.c.l.b16 %v141
  %v578 = vunpack.c.l.b16 %v142
  %v579 = vunpack.c.l.b16 %v143
  %v580 = vunpack.c.l.b16 %v144
  %v581 = vunpack.c.l.b16 %v145
  %v582 = vunpack.c.l.b16 %v146
  %v583 = vunpack.c.l.b16 %v147
  %v584 = vunpack.c.l.b16 %v148
  %v585 = vunpack.c.l.b16 %v149
  %v586 = vunpack.c.l.b16 %v150
  %v587 = vunpack.c.l.b16 %v151
  %v588 = vunpack.c.l.b16 %v152
  %v589 = vunpack.c.l.b16 %v153
  %v590 = vunpack.c.l.b16 %v154
  %v591 = vunpack.c.l.b16 %v155
  %v592 = vunpack.c.l.b16 %v156
  %v593 = vunpack.c.l.b16 %v157
  %v594 = vpack.c.b16 %v499, %v498
  %v595 = vpack.c.b16 %v501, %v500
  %v596 = vpack.c.b16 %v503, %v502
  %v597 = vpack.c.b16 %v505, %v504
  %v598 = vpack.c.b16 %v507, %v506
  %v599 = vpack.c.b16 %v509, %v508
  %v600 = vpack.c.b16 %v511, %v510
  %v601 = vpack.c.b16 %v513, %v512
  %v602 = vpack.c.b16 %v515, %v514
  %v603 = vpack.c.b16 %v517, %v516
  %v604 = vpack.c.b16 %v519, %v518
  %v605 = vpack.c.b16 %v521, %v520
  %v606 = vpack.c.b16 %v523, %v522
  %v607 = vpack.c.b16 %v525, %v524
  %v608 = vpack.c.b16 %v527, %v526
  %v609 = vpack.c.b16 %v529, %v528
  %v610 = vpack.c.b16 %v531, %v530
  %v611 = vpack.c.b16 %v533, %v532
  %v612 = vpack.c.b16 %v535, %v534
  %v613 = vpack.c.b16 %v537, %v536
  %v614 = vpack.c.b16 %v539, %v538
  %v615 = vpack.c.b16 %v541, %v540
  %v616 = vpack.c.b16 %v543, %v542
  %v617 = vpack.c.b16 %v545, %v544
  %v618 = vpack.c.b16 %v547, %v546
  %v619 = vpack.c.b16 %v549, %v548
  %v620 = vpack.c.b16 %v551, %v550
  %v621 = vpack.c.b16 %v553, %v552
  %v622 = vpack.c.b16 %v555, %v554
  %v623 = vpack.c.b16 %v557, %v556
  %v624 = vpack.c.b16 %v559, %v558
  %v625 = vpack.c.b16 %v561, %v560
  %v626 = vpack.c.b16 %v563, %v562
  %v627 = vpack.c.b16 %v565, %v564
  %v628 = vpack.c.b16 %v567, %v566
  %v629 = vpack.c.b16 %v569, %v568
  %v630 = vpack.c.b16 %v571, %v570
  %v631 = vpack.c.b16 %v573, %v572
  %v632 = vpack.c.b16 %v575, %v574
  %v633 = vpack.c.b16 %v577, %v576
  %v634 = vpack.c.b16 %v579, %v578
  %v635 = vpack.c.b16 %v581, %v580
  %v636 = vpack.c.b16 %v583, %v582
  %v637 = vpack.c.b16 %v585, %v584
  %v638 = vpack.c.b16 %v587, %v586
  %v639 = vpack.c.b16 %v589, %v588
  %v640 = vpack.c.b16 %v591, %v590
  %v641 = vpack.c.b16 %v593, %v592
  %690 = vmatpush.bf16.msra.mxu0 %v601
  %691 = vmatpush.bf16.msra.mxu0 %v600
  %692 = vmatpush.bf16.msra.mxu0 %v599
  %693 = vmatpush.bf16.msra.mxu0 %v598
  %694 = vmatpush.bf16.msra.mxu0 %v597
  %695 = vmatpush.bf16.msra.mxu0 %v596
  %696 = vmatpush.bf16.msra.mxu0 %v595
  %697 = vmatpush.bf16.msra.mxu0 %v594
  %698 = vmatmul.bf16.gmra.mxu0 %v306
  %v699 = vpop.f32.mrf.mxu0
  %v700 = vadd.f32 %v160, %v699
  %v701 = vpop.f32.mrf.mxu0
  %v702 = vadd.f32 %v160, %v701
  %703 = vmatmul.bf16.gmra.mxu0 %v312
  %v704 = vpop.f32.mrf.mxu0
  %v705 = vadd.f32 %v160, %v704
  %v706 = vpop.f32.mrf.mxu0
  %v707 = vadd.f32 %v160, %v706
  %708 = vmatmul.bf16.gmra.mxu0 %v318
  %v709 = vpop.f32.mrf.mxu0
  %v710 = vadd.f32 %v160, %v709
  %v711 = vpop.f32.mrf.mxu0
  %v712 = vadd.f32 %v160, %v711
  %713 = vmatmul.bf16.gmra.mxu0 %v324
  %v714 = vpop.f32.mrf.mxu0
  %v715 = vadd.f32 %v160, %v714
  %v716 = vpop.f32.mrf.mxu0
  %v717 = vadd.f32 %v160, %v716
  %718 = vmatmul.bf16.gmra.mxu0 %v330
  %v719 = vpop.f32.mrf.mxu0
  %v720 = vadd.f32 %v160, %v719
  %v721 = vpop.f32.mrf.mxu0
  %v722 = vadd.f32 %v160, %v721
  %723 = vmatmul.bf16.gmra.mxu0 %v336
  %v724 = vpop.f32.mrf.mxu0
  %v725 = vadd.f32 %v160, %v724
  %v726 = vpop.f32.mrf.mxu0
  %v727 = vadd.f32 %v160, %v726
  %728 = vmatmul.bf16.gmra.mxu0 %v342
  %v729 = vpop.f32.mrf.mxu0
  %v730 = vadd.f32 %v160, %v729
  %v731 = vpop.f32.mrf.mxu0
  %v732 = vadd.f32 %v160, %v731
  %733 = vmatmul.bf16.gmra.mxu0 %v348
  %v734 = vpop.f32.mrf.mxu0
  %v735 = vadd.f32 %v160, %v734
  %v736 = vpop.f32.mrf.mxu0
  %v737 = vadd.f32 %v160, %v736
  %738 = vdwg.mxu0
  %739 = vmatpush.bf16.msra.mxu0 %v609
  %740 = vmatpush.bf16.msra.mxu0 %v608
  %741 = vmatpush.bf16.msra.mxu0 %v607
  %742 = vmatpush.bf16.msra.mxu0 %v606
  %743 = vmatpush.bf16.msra.mxu0 %v605
  %744 = vmatpush.bf16.msra.mxu0 %v604
  %745 = vmatpush.bf16.msra.mxu0 %v603
  %746 = vmatpush.bf16.msra.mxu0 %v602
  %747 = vmatmul.bf16.gmra.mxu0 %v307
  %v748 = vpop.f32.mrf.mxu0
  %v749 = vadd.f32 %v700, %v748
  %v750 = vpop.f32.mrf.mxu0
  %v751 = vadd.f32 %v702, %v750
  %752 = vmatmul.bf16.gmra.mxu0 %v313
  %v753 = vpop.f32.mrf.mxu0
  %v754 = vadd.f32 %v705, %v753
  %v755 = vpop.f32.mrf.mxu0
  %v756 = vadd.f32 %v707, %v755
  %757 = vmatmul.bf16.gmra.mxu0 %v319
  %v758 = vpop.f32.mrf.mxu0
  %v759 = vadd.f32 %v710, %v758
  %v760 = vpop.f32.mrf.mxu0
  %v761 = vadd.f32 %v712, %v760
  %762 = vmatmul.bf16.gmra.mxu0 %v325
  %v763 = vpop.f32.mrf.mxu0
  %v764 = vadd.f32 %v715, %v763
  %v765 = vpop.f32.mrf.mxu0
  %v766 = vadd.f32 %v717, %v765
  %767 = vmatmul.bf16.gmra.mxu0 %v331
  %v768 = vpop.f32.mrf.mxu0
  %v769 = vadd.f32 %v720, %v768
  %v770 = vpop.f32.mrf.mxu0
  %v771 = vadd.f32 %v722, %v770
  %772 = vmatmul.bf16.gmra.mxu0 %v337
  %v773 = vpop.f32.mrf.mxu0
  %v774 = vadd.f32 %v725, %v773
  %v775 = vpop.f32.mrf.mxu0
  %v776 = vadd.f32 %v727, %v775
  %777 = vmatmul.bf16.gmra.mxu0 %v343
  %v778 = vpop.f32.mrf.mxu0
  %v779 = vadd.f32 %v730, %v778
  %v780 = vpop.f32.mrf.mxu0
  %v781 = vadd.f32 %v732, %v780
  %782 = vmatmul.bf16.gmra.mxu0 %v349
  %v783 = vpop.f32.mrf.mxu0
  %v784 = vadd.f32 %v735, %v783
  %v785 = vpop.f32.mrf.mxu0
  %v786 = vadd.f32 %v737, %v785
  %787 = vdwg.mxu0
  %788 = vmatpush.bf16.msra.mxu0 %v617
  %789 = vmatpush.bf16.msra.mxu0 %v616
  %790 = vmatpush.bf16.msra.mxu0 %v615
  %791 = vmatpush.bf16.msra.mxu0 %v614
  %792 = vmatpush.bf16.msra.mxu0 %v613
  %793 = vmatpush.bf16.msra.mxu0 %v612
  %794 = vmatpush.bf16.msra.mxu0 %v611
  %795 = vmatpush.bf16.msra.mxu0 %v610
  %796 = vmatmul.bf16.gmra.mxu0 %v308
  %v797 = vpop.f32.mrf.mxu0
  %v798 = vadd.f32 %v749, %v797
  %v799 = vpop.f32.mrf.mxu0
  %v800 = vadd.f32 %v751, %v799
  %801 = vmatmul.bf16.gmra.mxu0 %v314
  %v802 = vpop.f32.mrf.mxu0
  %v803 = vadd.f32 %v754, %v802
  %v804 = vpop.f32.mrf.mxu0
  %v805 = vadd.f32 %v756, %v804
  %806 = vmatmul.bf16.gmra.mxu0 %v320
  %v807 = vpop.f32.mrf.mxu0
  %v808 = vadd.f32 %v759, %v807
  %v809 = vpop.f32.mrf.mxu0
  %v810 = vadd.f32 %v761, %v809
  %811 = vmatmul.bf16.gmra.mxu0 %v326
  %v812 = vpop.f32.mrf.mxu0
  %v813 = vadd.f32 %v764, %v812
  %v814 = vpop.f32.mrf.mxu0
  %v815 = vadd.f32 %v766, %v814
  %816 = vmatmul.bf16.gmra.mxu0 %v332
  %v817 = vpop.f32.mrf.mxu0
  %v818 = vadd.f32 %v769, %v817
  %v819 = vpop.f32.mrf.mxu0
  %v820 = vadd.f32 %v771, %v819
  %821 = vmatmul.bf16.gmra.mxu0 %v338
  %v822 = vpop.f32.mrf.mxu0
  %v823 = vadd.f32 %v774, %v822
  %v824 = vpop.f32.mrf.mxu0
  %v825 = vadd.f32 %v776, %v824
  %826 = vmatmul.bf16.gmra.mxu0 %v344
  %v827 = vpop.f32.mrf.mxu0
  %v828 = vadd.f32 %v779, %v827
  %v829 = vpop.f32.mrf.mxu0
  %v830 = vadd.f32 %v781, %v829
  %831 = vmatmul.bf16.gmra.mxu0 %v350
  %v832 = vpop.f32.mrf.mxu0
  %v833 = vadd.f32 %v784, %v832
  %v834 = vpop.f32.mrf.mxu0
  %v835 = vadd.f32 %v786, %v834
  %836 = vdwg.mxu0
  %837 = vmatpush.bf16.msra.mxu0 %v625
  %838 = vmatpush.bf16.msra.mxu0 %v624
  %839 = vmatpush.bf16.msra.mxu0 %v623
  %840 = vmatpush.bf16.msra.mxu0 %v622
  %841 = vmatpush.bf16.msra.mxu0 %v621
  %842 = vmatpush.bf16.msra.mxu0 %v620
  %843 = vmatpush.bf16.msra.mxu0 %v619
  %844 = vmatpush.bf16.msra.mxu0 %v618
  %845 = vmatmul.bf16.gmra.mxu0 %v309
  %v846 = vpop.f32.mrf.mxu0
  %v847 = vadd.f32 %v798, %v846
  %v848 = vpop.f32.mrf.mxu0
  %v849 = vadd.f32 %v800, %v848
  %850 = vmatmul.bf16.gmra.mxu0 %v315
  %v851 = vpop.f32.mrf.mxu0
  %v852 = vadd.f32 %v803, %v851
  %v853 = vpop.f32.mrf.mxu0
  %v854 = vadd.f32 %v805, %v853
  %855 = vmatmul.bf16.gmra.mxu0 %v321
  %v856 = vpop.f32.mrf.mxu0
  %v857 = vadd.f32 %v808, %v856
  %v858 = vpop.f32.mrf.mxu0
  %v859 = vadd.f32 %v810, %v858
  %860 = vmatmul.bf16.gmra.mxu0 %v327
  %v861 = vpop.f32.mrf.mxu0
  %v862 = vadd.f32 %v813, %v861
  %v863 = vpop.f32.mrf.mxu0
  %v864 = vadd.f32 %v815, %v863
  %865 = vmatmul.bf16.gmra.mxu0 %v333
  %v866 = vpop.f32.mrf.mxu0
  %v867 = vadd.f32 %v818, %v866
  %v868 = vpop.f32.mrf.mxu0
  %v869 = vadd.f32 %v820, %v868
  %870 = vmatmul.bf16.gmra.mxu0 %v339
  %v871 = vpop.f32.mrf.mxu0
  %v872 = vadd.f32 %v823, %v871
  %v873 = vpop.f32.mrf.mxu0
  %v874 = vadd.f32 %v825, %v873
  %875 = vmatmul.bf16.gmra.mxu0 %v345
  %v876 = vpop.f32.mrf.mxu0
  %v877 = vadd.f32 %v828, %v876
  %v878 = vpop.f32.mrf.mxu0
  %v879 = vadd.f32 %v830, %v878
  %880 = vmatmul.bf16.gmra.mxu0 %v351
  %v881 = vpop.f32.mrf.mxu0
  %v882 = vadd.f32 %v833, %v881
  %v883 = vpop.f32.mrf.mxu0
  %v884 = vadd.f32 %v835, %v883
  %885 = vdwg.mxu0
  %886 = vmatpush.bf16.msra.mxu0 %v633
  %887 = vmatpush.bf16.msra.mxu0 %v632
  %888 = vmatpush.bf16.msra.mxu0 %v631
  %889 = vmatpush.bf16.msra.mxu0 %v630
  %890 = vmatpush.bf16.msra.mxu0 %v629
  %891 = vmatpush.bf16.msra.mxu0 %v628
  %892 = vmatpush.bf16.msra.mxu0 %v627
  %893 = vmatpush.bf16.msra.mxu0 %v626
  %894 = vmatmul.bf16.gmra.mxu0 %v310
  %v895 = vpop.f32.mrf.mxu0
  %v896 = vadd.f32 %v847, %v895
  %v897 = vpop.f32.mrf.mxu0
  %v898 = vadd.f32 %v849, %v897
  %899 = vmatmul.bf16.gmra.mxu0 %v316
  %v900 = vpop.f32.mrf.mxu0
  %v901 = vadd.f32 %v852, %v900
  %v902 = vpop.f32.mrf.mxu0
  %v903 = vadd.f32 %v854, %v902
  %904 = vmatmul.bf16.gmra.mxu0 %v322
  %v905 = vpop.f32.mrf.mxu0
  %v906 = vadd.f32 %v857, %v905
  %v907 = vpop.f32.mrf.mxu0
  %v908 = vadd.f32 %v859, %v907
  %909 = vmatmul.bf16.gmra.mxu0 %v328
  %v910 = vpop.f32.mrf.mxu0
  %v911 = vadd.f32 %v862, %v910
  %v912 = vpop.f32.mrf.mxu0
  %v913 = vadd.f32 %v864, %v912
  %914 = vmatmul.bf16.gmra.mxu0 %v334
  %v915 = vpop.f32.mrf.mxu0
  %v916 = vadd.f32 %v867, %v915
  %v917 = vpop.f32.mrf.mxu0
  %v918 = vadd.f32 %v869, %v917
  %919 = vmatmul.bf16.gmra.mxu0 %v340
  %v920 = vpop.f32.mrf.mxu0
  %v921 = vadd.f32 %v872, %v920
  %v922 = vpop.f32.mrf.mxu0
  %v923 = vadd.f32 %v874, %v922
  %924 = vmatmul.bf16.gmra.mxu0 %v346
  %v925 = vpop.f32.mrf.mxu0
  %v926 = vadd.f32 %v877, %v925
  %v927 = vpop.f32.mrf.mxu0
  %v928 = vadd.f32 %v879, %v927
  %929 = vmatmul.bf16.gmra.mxu0 %v352
  %v930 = vpop.f32.mrf.mxu0
  %v931 = vadd.f32 %v882, %v930
  %v932 = vpop.f32.mrf.mxu0
  %v933 = vadd.f32 %v884, %v932
  %934 = vdwg.mxu0
  %935 = vmatpush.bf16.msra.mxu0 %v641
  %936 = vmatpush.bf16.msra.mxu0 %v640
  %937 = vmatpush.bf16.msra.mxu0 %v639
  %938 = vmatpush.bf16.msra.mxu0 %v638
  %939 = vmatpush.bf16.msra.mxu0 %v637
  %940 = vmatpush.bf16.msra.mxu0 %v636
  %941 = vmatpush.bf16.msra.mxu0 %v635
  %942 = vmatpush.bf16.msra.mxu0 %v634
  %943 = vmatmul.bf16.gmra.mxu0 %v311
  %v944 = vpop.f32.mrf.mxu0
  %v945 = vadd.f32 %v896, %v944
  %v946 = vpop.f32.mrf.mxu0
  %v947 = vadd.f32 %v898, %v946
  %948 = vmatmul.bf16.gmra.mxu0 %v317
  %v949 = vpop.f32.mrf.mxu0
  %v950 = vadd.f32 %v901, %v949
  %v951 = vpop.f32.mrf.mxu0
  %v952 = vadd.f32 %v903, %v951
  %953 = vmatmul.bf16.gmra.mxu0 %v323
  %v954 = vpop.f32.mrf.mxu0
  %v955 = vadd.f32 %v906, %v954
  %v956 = vpop.f32.mrf.mxu0
  %v957 = vadd.f32 %v908, %v956
  %958 = vmatmul.bf16.gmra.mxu0 %v329
  %v959 = vpop.f32.mrf.mxu0
  %v960 = vadd.f32 %v911, %v959
  %v961 = vpop.f32.mrf.mxu0
  %v962 = vadd.f32 %v913, %v961
  %963 = vmatmul.bf16.gmra.mxu0 %v335
  %v964 = vpop.f32.mrf.mxu0
  %v965 = vadd.f32 %v916, %v964
  %v966 = vpop.f32.mrf.mxu0
  %v967 = vadd.f32 %v918, %v966
  %968 = vmatmul.bf16.gmra.mxu0 %v341
  %v969 = vpop.f32.mrf.mxu0
  %v970 = vadd.f32 %v921, %v969
  %v971 = vpop.f32.mrf.mxu0
  %v972 = vadd.f32 %v923, %v971
  %973 = vmatmul.bf16.gmra.mxu0 %v347
  %v974 = vpop.f32.mrf.mxu0
  %v975 = vadd.f32 %v926, %v974
  %v976 = vpop.f32.mrf.mxu0
  %v977 = vadd.f32 %v928, %v976
  %978 = vmatmul.bf16.gmra.mxu0 %v353
  %v979 = vpop.f32.mrf.mxu0
  %v980 = vadd.f32 %v931, %v979
  %v981 = vpop.f32.mrf.mxu0
  %v982 = vadd.f32 %v933, %v981
  %983 = vdwg.mxu0
  %v984 = vmax.f32 %v945, 0.0
  %v985 = vmax.f32 %v947, 0.0
  %v986 = vmax.f32 %v950, 0.0
  %v987 = vmax.f32 %v952, 0.0
  %v988 = vmax.f32 %v955, 0.0
  %v989 = vmax.f32 %v957, 0.0
  %v990 = vmax.f32 %v960, 0.0
  %v991 = vmax.f32 %v962, 0.0
  %v992 = vmax.f32 %v965, 0.0
  %v993 = vmax.f32 %v967, 0.0
  %v994 = vmax.f32 %v970, 0.0
  %v995 = vmax.f32 %v972, 0.0
  %v996 = vmax.f32 %v975, 0.0
  %v997 = vmax.f32 %v977, 0.0
  %v998 = vmax.f32 %v980, 0.0
  %v999 = vmax.f32 %v982, 0.0
  %v1000 = vpack.c.bf16 %v984, %v984
  %v1001 = vpack.c.bf16 %v985, %v985
  %v1002 = vpack.c.bf16 %v986, %v986
  %v1003 = vpack.c.bf16 %v987, %v987
  %v1004 = vpack.c.bf16 %v988, %v988
  %v1005 = vpack.c.bf16 %v989, %v989
  %v1006 = vpack.c.bf16 %v990, %v990
  %v1007 = vpack.c.bf16 %v991, %v991
  %v1008 = vpack.c.bf16 %v992, %v992
  %v1009 = vpack.c.bf16 %v993, %v993
  %v1010 = vpack.c.bf16 %v994, %v994
  %v1011 = vpack.c.bf16 %v995, %v995
  %v1012 = vpack.c.bf16 %v996, %v996
  %v1013 = vpack.c.bf16 %v997, %v997
  %v1014 = vpack.c.bf16 %v998, %v998
  %v1015 = vpack.c.bf16 %v999, %v999
  %1016 = vst [vmem:[%s3] sm:$0xf] %v1000
  %1017 = vst [vmem:[%s3 + $0x4] sm:$0xf] %v1001
  %1018 = vst [vmem:[%s3 + $0x8] sm:$0xf] %v1002
  %1019 = vst [vmem:[%s3 + $0xc] sm:$0xf] %v1003
  %1020 = vst [vmem:[%s3 + $0x10] sm:$0xf] %v1004
  %1021 = vst [vmem:[%s3 + $0x14] sm:$0xf] %v1005
  %1022 = vst [vmem:[%s3 + $0x18] sm:$0xf] %v1006
  %1023 = vst [vmem:[%s3 + $0x1c] sm:$0xf] %v1007
  %1024 = vst [vmem:[%s3 + $0x20] sm:$0xf] %v1008
  %1025 = vst [vmem:[%s3 + $0x24] sm:$0xf] %v1009
  %1026 = vst [vmem:[%s3 + $0x28] sm:$0xf] %v1010
  %1027 = vst [vmem:[%s3 + $0x2c] sm:$0xf] %v1011
  %1028 = vst [vmem:[%s3 + $0x30] sm:$0xf] %v1012
  %1029 = vst [vmem:[%s3 + $0x34] sm:$0xf] %v1013
  %1030 = vst [vmem:[%s3 + $0x38] sm:$0xf] %v1014
  %1031 = vst [vmem:[%s3 + $0x3c] sm:$0xf] %v1015
  // Predicated region
  $region14: #{actor_forward.4} parent=0 // pred_check
    _
  $region15: #{actor_forward.4} parent=0 // pred_check_branch
    %1033 = sbr.rel (0) target = $region17
  $region16: #{actor_forward.4} parent=0 // pred_region
    _
  $region17: #{actor_forward.4} parent=0 // pred_fallthru
    _
  // Predicated region
  $region18: #{actor_forward.4} parent=0 // pred_check
    _
  $region19: #{actor_forward.4} parent=0 // pred_check_branch
    %1035 = sbr.rel (0) target = $region21
  $region20: #{actor_forward.4} parent=0 // pred_region
    _
  $region21: #{actor_forward.4} parent=0 // pred_fallthru
    _

// kernel: actor_forward.5
$region0: #{actor_forward.5}
  #allocation0 [shape = 'u32[]', space=smem, size = 0x4, offset = 0x4, fixed_abs, tag = 'smem constant byte address 0x4 - core index']
  #allocation1 [shape = 'u32[72,128]{1,0:T(1,128)}', space=vmem, size = 0x9000, scoped, tag = 'internal scratch']
  %s0 = inlined_call_operand.vmem [shape: bf16[18,512], index: 0, kind: input, shape index: {}]
  %s1 = inlined_call_operand.vmem [shape: bf16[512,128], index: 1, kind: input, shape index: {}]
  %s2 = inlined_call_operand.vmem [shape: f32[1,128], index: 2, kind: input, shape index: {}]
  %s3 = inlined_call_operand.vmem [shape: bf16[18,128], index: 3, kind: output, shape index: {}]
  %s4 = sld [smem:[#allocation0]]
  $region22: #{actor_forward.5} parent=0
    _
  %s6 = ssub.s32 1, %s4
  %s7 = scalar_select 0, %s6, %s4
  // Predicated region
  $region2: #{actor_forward.5} parent=0 // pred_check
    _
  $region3: #{actor_forward.5} parent=0 // pred_check_branch
    %9 = sbr.rel (0) target = $region5
  $region4: #{actor_forward.5} parent=0 // pred_region
    _
  $region5: #{actor_forward.5} parent=0 // pred_fallthru
    _
  // Predicated region
  $region6: #{actor_forward.5} parent=0 // pred_check
    _
  $region7: #{actor_forward.5} parent=0 // pred_check_branch
    %11 = sbr.rel (0) target = $region9
  $region8: #{actor_forward.5} parent=0 // pred_region
    _
  $region9: #{actor_forward.5} parent=0 // pred_fallthru
    _
  // Predicated region
  $region10: #{actor_forward.5} parent=0 // pred_check
    _
  $region11: #{actor_forward.5} parent=0 // pred_check_branch
    %13 = sbr.rel (0) target = $region13
  $region12: #{actor_forward.5} parent=0 // pred_region
    _
  $region13: #{actor_forward.5} parent=0 // pred_fallthru
    _
  %v14 = vld [vmem:[%s0] sm:$0xff]
  %v15 = vld [vmem:[%s0 + $0x8] sm:$0xff]
  %v16 = vld [vmem:[%s0 + $0x10] sm:$0xff]
  %v17 = vld [vmem:[%s0 + $0x18] sm:$0xff]
  %v18 = vld [vmem:[%s0 + $0x20] sm:$0x11]
  %v19 = vld [vmem:[%s0 + $0x28] sm:$0x11]
  %v20 = vld [vmem:[%s1] sm:$0xf]
  %v21 = vld [vmem:[%s1 + $0x4] sm:$0xf]
  %v22 = vld [vmem:[%s1 + $0x8] sm:$0xf]
  %v23 = vld [vmem:[%s1 + $0xc] sm:$0xf]
  %v24 = vld [vmem:[%s1 + $0x10] sm:$0xf]
  %v25 = vld [vmem:[%s1 + $0x14] sm:$0xf]
  %v26 = vld [vmem:[%s1 + $0x18] sm:$0xf]
  %v27 = vld [vmem:[%s1 + $0x1c] sm:$0xf]
  %v28 = vld [vmem:[%s1 + $0x20] sm:$0xf]
  %v29 = vld [vmem:[%s1 + $0x24] sm:$0xf]
  %v30 = vld [vmem:[%s1 + $0x28] sm:$0xf]
  %v31 = vld [vmem:[%s1 + $0x2c] sm:$0xf]
  %v32 = vld [vmem:[%s1 + $0x30] sm:$0xf]
  %v33 = vld [vmem:[%s1 + $0x34] sm:$0xf]
  %v34 = vld [vmem:[%s1 + $0x38] sm:$0xf]
  %v35 = vld [vmem:[%s1 + $0x3c] sm:$0xf]
  %v36 = vld [vmem:[%s1 + $0x40] sm:$0xf]
  %v37 = vld [vmem:[%s1 + $0x44] sm:$0xf]
  %v38 = vld [vmem:[%s1 + $0x48] sm:$0xf]
  %v39 = vld [vmem:[%s1 + $0x4c] sm:$0xf]
  %v40 = vld [vmem:[%s1 + $0x50] sm:$0xf]
  %v41 = vld [vmem:[%s1 + $0x54] sm:$0xf]
  %v42 = vld [vmem:[%s1 + $0x58] sm:$0xf]
  %v43 = vld [vmem:[%s1 + $0x5c] sm:$0xf]
  %v44 = vld [vmem:[%s1 + $0x60] sm:$0xf]
  %v45 = vld [vmem:[%s1 + $0x64] sm:$0xf]
  %v46 = vld [vmem:[%s1 + $0x68] sm:$0xf]
  %v47 = vld [vmem:[%s1 + $0x6c] sm:$0xf]
  %v48 = vld [vmem:[%s1 + $0x70] sm:$0xf]
  %v49 = vld [vmem:[%s1 + $0x74] sm:$0xf]
  %v50 = vld [vmem:[%s1 + $0x78] sm:$0xf]
  %v51 = vld [vmem:[%s1 + $0x7c] sm:$0xf]
  %v52 = vld [vmem:[%s1 + $0x80] sm:$0xf]
  %v53 = vld [vmem:[%s1 + $0x84] sm:$0xf]
  %v54 = vld [vmem:[%s1 + $0x88] sm:$0xf]
  %v55 = vld [vmem:[%s1 + $0x8c] sm:$0xf]
  %v56 = vld [vmem:[%s1 + $0x90] sm:$0xf]
  %v57 = vld [vmem:[%s1 + $0x94] sm:$0xf]
  %v58 = vld [vmem:[%s1 + $0x98] sm:$0xf]
  %v59 = vld [vmem:[%s1 + $0x9c] sm:$0xf]
  %v60 = vld [vmem:[%s1 + $0xa0] sm:$0xf]
  %v61 = vld [vmem:[%s1 + $0xa4] sm:$0xf]
  %v62 = vld [vmem:[%s1 + $0xa8] sm:$0xf]
  %v63 = vld [vmem:[%s1 + $0xac] sm:$0xf]
  %v64 = vld [vmem:[%s1 + $0xb0] sm:$0xf]
  %v65 = vld [vmem:[%s1 + $0xb4] sm:$0xf]
  %v66 = vld [vmem:[%s1 + $0xb8] sm:$0xf]
  %v67 = vld [vmem:[%s1 + $0xbc] sm:$0xf]
  %v68 = vld [vmem:[%s1 + $0xc0] sm:$0xf]
  %v69 = vld [vmem:[%s1 + $0xc4] sm:$0xf]
  %v70 = vld [vmem:[%s1 + $0xc8] sm:$0xf]
  %v71 = vld [vmem:[%s1 + $0xcc] sm:$0xf]
  %v72 = vld [vmem:[%s1 + $0xd0] sm:$0xf]
  %v73 = vld [vmem:[%s1 + $0xd4] sm:$0xf]
  %v74 = vld [vmem:[%s1 + $0xd8] sm:$0xf]
  %v75 = vld [vmem:[%s1 + $0xdc] sm:$0xf]
  %v76 = vld [vmem:[%s1 + $0xe0] sm:$0xf]
  %v77 = vld [vmem:[%s1 + $0xe4] sm:$0xf]
  %v78 = vld [vmem:[%s1 + $0xe8] sm:$0xf]
  %v79 = vld [vmem:[%s1 + $0xec] sm:$0xf]
  %v80 = vld [vmem:[%s1 + $0xf0] sm:$0xf]
  %v81 = vld [vmem:[%s1 + $0xf4] sm:$0xf]
  %v82 = vld [vmem:[%s1 + $0xf8] sm:$0xf]
  %v83 = vld [vmem:[%s1 + $0xfc] sm:$0xf]
  %v84 = vld [vmem:[%s2] sm:$0x1]
  %v86 = vperm.slane %v84, 0
  %v94 = vunpack.c.l.b16 %v14
  %v95 = vunpack.c.h.b16 %v14
  %v96 = vunpack.c.l.b16 %v15
  %v97 = vunpack.c.h.b16 %v15
  %v98 = vunpack.c.l.b16 %v16
  %v99 = vunpack.c.h.b16 %v16
  %v100 = vunpack.c.l.b16 %v17
  %v101 = vunpack.c.h.b16 %v17
  %v102 = vunpack.c.l.b16 %v18
  %v103 = vunpack.c.h.b16 %v18
  %v104 = vunpack.c.l.b16 %v19
  %v105 = vunpack.c.h.b16 %v19
  %v106 = vpack.c.b16 %v98, %v94
  %v107 = vpack.c.b16 %v99, %v95
  %v108 = vpack.c.b16 %v100, %v96
  %v109 = vpack.c.b16 %v101, %v97
  %v110 = vpack.c.b16 %v102, %v102
  %v111 = vpack.c.b16 %v103, %v103
  %v112 = vpack.c.b16 %v104, %v104
  %v113 = vpack.c.b16 %v105, %v105
  %v186 = vunpack.c.l.b16 %v20
  %v187 = vunpack.c.l.b16 %v21
  %v188 = vunpack.c.l.b16 %v22
  %v189 = vunpack.c.l.b16 %v23
  %v190 = vunpack.c.l.b16 %v24
  %v191 = vunpack.c.l.b16 %v25
  %v192 = vunpack.c.l.b16 %v26
  %v193 = vunpack.c.l.b16 %v27
  %v194 = vunpack.c.l.b16 %v28
  %v195 = vunpack.c.l.b16 %v29
  %v196 = vunpack.c.l.b16 %v30
  %v197 = vunpack.c.l.b16 %v31
  %v198 = vunpack.c.l.b16 %v32
  %v199 = vunpack.c.l.b16 %v33
  %v200 = vunpack.c.l.b16 %v34
  %v201 = vunpack.c.l.b16 %v35
  %v202 = vunpack.c.l.b16 %v36
  %v203 = vunpack.c.l.b16 %v37
  %v204 = vunpack.c.l.b16 %v38
  %v205 = vunpack.c.l.b16 %v39
  %v206 = vunpack.c.l.b16 %v40
  %v207 = vunpack.c.l.b16 %v41
  %v208 = vunpack.c.l.b16 %v42
  %v209 = vunpack.c.l.b16 %v43
  %v210 = vunpack.c.l.b16 %v44
  %v211 = vunpack.c.l.b16 %v45
  %v212 = vunpack.c.l.b16 %v46
  %v213 = vunpack.c.l.b16 %v47
  %v214 = vunpack.c.l.b16 %v48
  %v215 = vunpack.c.l.b16 %v49
  %v216 = vunpack.c.l.b16 %v50
  %v217 = vunpack.c.l.b16 %v51
  %v218 = vunpack.c.l.b16 %v52
  %v219 = vunpack.c.l.b16 %v53
  %v220 = vunpack.c.l.b16 %v54
  %v221 = vunpack.c.l.b16 %v55
  %v222 = vunpack.c.l.b16 %v56
  %v223 = vunpack.c.l.b16 %v57
  %v224 = vunpack.c.l.b16 %v58
  %v225 = vunpack.c.l.b16 %v59
  %v226 = vunpack.c.l.b16 %v60
  %v227 = vunpack.c.l.b16 %v61
  %v228 = vunpack.c.l.b16 %v62
  %v229 = vunpack.c.l.b16 %v63
  %v230 = vunpack.c.l.b16 %v64
  %v231 = vunpack.c.l.b16 %v65
  %v232 = vunpack.c.l.b16 %v66
  %v233 = vunpack.c.l.b16 %v67
  %v234 = vunpack.c.l.b16 %v68
  %v235 = vunpack.c.l.b16 %v69
  %v236 = vunpack.c.l.b16 %v70
  %v237 = vunpack.c.l.b16 %v71
  %v238 = vunpack.c.l.b16 %v72
  %v239 = vunpack.c.l.b16 %v73
  %v240 = vunpack.c.l.b16 %v74
  %v241 = vunpack.c.l.b16 %v75
  %v242 = vunpack.c.l.b16 %v76
  %v243 = vunpack.c.l.b16 %v77
  %v244 = vunpack.c.l.b16 %v78
  %v245 = vunpack.c.l.b16 %v79
  %v246 = vunpack.c.l.b16 %v80
  %v247 = vunpack.c.l.b16 %v81
  %v248 = vunpack.c.l.b16 %v82
  %v249 = vunpack.c.l.b16 %v83
  %v250 = vpack.c.b16 %v187, %v186
  %v251 = vpack.c.b16 %v189, %v188
  %v252 = vpack.c.b16 %v191, %v190
  %v253 = vpack.c.b16 %v193, %v192
  %v254 = vpack.c.b16 %v195, %v194
  %v255 = vpack.c.b16 %v197, %v196
  %v256 = vpack.c.b16 %v199, %v198
  %v257 = vpack.c.b16 %v201, %v200
  %v258 = vpack.c.b16 %v203, %v202
  %v259 = vpack.c.b16 %v205, %v204
  %v260 = vpack.c.b16 %v207, %v206
  %v261 = vpack.c.b16 %v209, %v208
  %v262 = vpack.c.b16 %v211, %v210
  %v263 = vpack.c.b16 %v213, %v212
  %v264 = vpack.c.b16 %v215, %v214
  %v265 = vpack.c.b16 %v217, %v216
  %v266 = vpack.c.b16 %v219, %v218
  %v267 = vpack.c.b16 %v221, %v220
  %v268 = vpack.c.b16 %v223, %v222
  %v269 = vpack.c.b16 %v225, %v224
  %v270 = vpack.c.b16 %v227, %v226
  %v271 = vpack.c.b16 %v229, %v228
  %v272 = vpack.c.b16 %v231, %v230
  %v273 = vpack.c.b16 %v233, %v232
  %v274 = vpack.c.b16 %v235, %v234
  %v275 = vpack.c.b16 %v237, %v236
  %v276 = vpack.c.b16 %v239, %v238
  %v277 = vpack.c.b16 %v241, %v240
  %v278 = vpack.c.b16 %v243, %v242
  %v279 = vpack.c.b16 %v245, %v244
  %v280 = vpack.c.b16 %v247, %v246
  %v281 = vpack.c.b16 %v249, %v248
  %314 = vmatpush.bf16.msra.mxu0 %v257
  %315 = vmatpush.bf16.msra.mxu0 %v256
  %316 = vmatpush.bf16.msra.mxu0 %v255
  %317 = vmatpush.bf16.msra.mxu0 %v254
  %318 = vmatpush.bf16.msra.mxu0 %v253
  %319 = vmatpush.bf16.msra.mxu0 %v252
  %320 = vmatpush.bf16.msra.mxu0 %v251
  %321 = vmatpush.bf16.msra.mxu0 %v250
  %322 = vmatmul.bf16.gmra.mxu0 %v106
  %v323 = vpop.f32.mrf.mxu0
  %v324 = vadd.f32 %v86, %v323
  %v325 = vpop.f32.mrf.mxu0
  %v326 = vadd.f32 %v86, %v325
  %327 = vmatmul.bf16.gmra.mxu0 %v110
  %v328 = vpop.f32.mrf.mxu0
  %v329 = vadd.f32 %v86, %v328
  %v330 = vpop.f32.mrf.mxu0
  %331 = vdwg.mxu0
  %332 = vmatpush.bf16.msra.mxu0 %v265
  %333 = vmatpush.bf16.msra.mxu0 %v264
  %334 = vmatpush.bf16.msra.mxu0 %v263
  %335 = vmatpush.bf16.msra.mxu0 %v262
  %336 = vmatpush.bf16.msra.mxu0 %v261
  %337 = vmatpush.bf16.msra.mxu0 %v260
  %338 = vmatpush.bf16.msra.mxu0 %v259
  %339 = vmatpush.bf16.msra.mxu0 %v258
  %340 = vmatmul.bf16.gmra.mxu0 %v107
  %v341 = vpop.f32.mrf.mxu0
  %v342 = vadd.f32 %v324, %v341
  %v343 = vpop.f32.mrf.mxu0
  %v344 = vadd.f32 %v326, %v343
  %345 = vmatmul.bf16.gmra.mxu0 %v111
  %v346 = vpop.f32.mrf.mxu0
  %v347 = vadd.f32 %v329, %v346
  %v348 = vpop.f32.mrf.mxu0
  %349 = vdwg.mxu0
  %350 = vmatpush.bf16.msra.mxu0 %v273
  %351 = vmatpush.bf16.msra.mxu0 %v272
  %352 = vmatpush.bf16.msra.mxu0 %v271
  %353 = vmatpush.bf16.msra.mxu0 %v270
  %354 = vmatpush.bf16.msra.mxu0 %v269
  %355 = vmatpush.bf16.msra.mxu0 %v268
  %356 = vmatpush.bf16.msra.mxu0 %v267
  %357 = vmatpush.bf16.msra.mxu0 %v266
  %358 = vmatmul.bf16.gmra.mxu0 %v108
  %v359 = vpop.f32.mrf.mxu0
  %v360 = vadd.f32 %v342, %v359
  %v361 = vpop.f32.mrf.mxu0
  %v362 = vadd.f32 %v344, %v361
  %363 = vmatmul.bf16.gmra.mxu0 %v112
  %v364 = vpop.f32.mrf.mxu0
  %v365 = vadd.f32 %v347, %v364
  %v366 = vpop.f32.mrf.mxu0
  %367 = vdwg.mxu0
  %368 = vmatpush.bf16.msra.mxu0 %v281
  %369 = vmatpush.bf16.msra.mxu0 %v280
  %370 = vmatpush.bf16.msra.mxu0 %v279
  %371 = vmatpush.bf16.msra.mxu0 %v278
  %372 = vmatpush.bf16.msra.mxu0 %v277
  %373 = vmatpush.bf16.msra.mxu0 %v276
  %374 = vmatpush.bf16.msra.mxu0 %v275
  %375 = vmatpush.bf16.msra.mxu0 %v274
  %376 = vmatmul.bf16.gmra.mxu0 %v109
  %v377 = vpop.f32.mrf.mxu0
  %v378 = vadd.f32 %v360, %v377
  %v379 = vpop.f32.mrf.mxu0
  %v380 = vadd.f32 %v362, %v379
  %381 = vmatmul.bf16.gmra.mxu0 %v113
  %v382 = vpop.f32.mrf.mxu0
  %v383 = vadd.f32 %v365, %v382
  %v384 = vpop.f32.mrf.mxu0
  %385 = vdwg.mxu0
  %v386 = vmax.f32 %v378, 0.0
  %v387 = vmax.f32 %v380, 0.0
  %v388 = vmax.f32 %v383, 0.0
  %v389 = vpack.c.bf16 %v386, %v386
  %v390 = vpack.c.bf16 %v387, %v387
  %v391 = vpack.c.bf16 %v388, %v388
  %392 = vst [vmem:[%s3] sm:$0xf] %v389
  %393 = vst [vmem:[%s3 + $0x4] sm:$0xf] %v390
  %394 = vst [vmem:[%s3 + $0x8] sm:$0x1] %v391
  // Predicated region
  $region14: #{actor_forward.5} parent=0 // pred_check
    _
  $region15: #{actor_forward.5} parent=0 // pred_check_branch
    %396 = sbr.rel (0) target = $region17
  $region16: #{actor_forward.5} parent=0 // pred_region
    _
  $region17: #{actor_forward.5} parent=0 // pred_fallthru
    _
  // Predicated region
  $region18: #{actor_forward.5} parent=0 // pred_check
    _
  $region19: #{actor_forward.5} parent=0 // pred_check_branch
    %398 = sbr.rel (0) target = $region21
  $region20: #{actor_forward.5} parent=0 // pred_region
    _
  $region21: #{actor_forward.5} parent=0 // pred_fallthru
    _

// kernel: actor_forward.6
$region0: #{actor_forward.6}
  #allocation0 [shape = 'u32[]', space=smem, size = 0x4, offset = 0x4, fixed_abs, tag = 'smem constant byte address 0x4 - core index']
  #allocation1 [shape = 'u32[72,128]{1,0:T(1,128)}', space=vmem, size = 0x9000, scoped, tag = 'internal scratch']
  %s0 = inlined_call_operand.vmem [shape: bf16[2,576], index: 0, kind: input, shape index: {}]
  %s1 = inlined_call_operand.vmem [shape: bf16[576,128], index: 1, kind: input, shape index: {}]
  %s2 = inlined_call_operand.vmem [shape: f32[1,128], index: 2, kind: input, shape index: {}]
  %s3 = inlined_call_operand.vmem [shape: bf16[2,128], index: 3, kind: output, shape index: {}]
  %s4 = sld [smem:[#allocation0]]
  $region22: #{actor_forward.6} parent=0
    _
  %s6 = ssub.s32 1, %s4
  %s7 = scalar_select 0, %s6, %s4
  // Predicated region
  $region2: #{actor_forward.6} parent=0 // pred_check
    _
  $region3: #{actor_forward.6} parent=0 // pred_check_branch
    %9 = sbr.rel (0) target = $region5
  $region4: #{actor_forward.6} parent=0 // pred_region
    _
  $region5: #{actor_forward.6} parent=0 // pred_fallthru
    _
  // Predicated region
  $region6: #{actor_forward.6} parent=0 // pred_check
    _
  $region7: #{actor_forward.6} parent=0 // pred_check_branch
    %11 = sbr.rel (0) target = $region9
  $region8: #{actor_forward.6} parent=0 // pred_region
    _
  $region9: #{actor_forward.6} parent=0 // pred_fallthru
    _
  // Predicated region
  $region10: #{actor_forward.6} parent=0 // pred_check
    _
  $region11: #{actor_forward.6} parent=0 // pred_check_branch
    %13 = sbr.rel (0) target = $region13
  $region12: #{actor_forward.6} parent=0 // pred_region
    _
  $region13: #{actor_forward.6} parent=0 // pred_fallthru
    _
  %v15 = vld [vmem:[%s0] sm:$0x1f]
  %v16 = vld [vmem:[%s1] sm:$0xf]
  %v17 = vld [vmem:[%s1 + $0x4] sm:$0xf]
  %v18 = vld [vmem:[%s1 + $0x8] sm:$0xf]
  %v19 = vld [vmem:[%s1 + $0xc] sm:$0xf]
  %v20 = vld [vmem:[%s1 + $0x10] sm:$0xf]
  %v21 = vld [vmem:[%s1 + $0x14] sm:$0xf]
  %v22 = vld [vmem:[%s1 + $0x18] sm:$0xf]
  %v23 = vld [vmem:[%s1 + $0x1c] sm:$0xf]
  %v24 = vld [vmem:[%s1 + $0x20] sm:$0xf]
  %v25 = vld [vmem:[%s1 + $0x24] sm:$0xf]
  %v26 = vld [vmem:[%s1 + $0x28] sm:$0xf]
  %v27 = vld [vmem:[%s1 + $0x2c] sm:$0xf]
  %v28 = vld [vmem:[%s1 + $0x30] sm:$0xf]
  %v29 = vld [vmem:[%s1 + $0x34] sm:$0xf]
  %v30 = vld [vmem:[%s1 + $0x38] sm:$0xf]
  %v31 = vld [vmem:[%s1 + $0x3c] sm:$0xf]
  %v32 = vld [vmem:[%s1 + $0x40] sm:$0xf]
  %v33 = vld [vmem:[%s1 + $0x44] sm:$0xf]
  %v34 = vld [vmem:[%s1 + $0x48] sm:$0xf]
  %v35 = vld [vmem:[%s1 + $0x4c] sm:$0xf]
  %v36 = vld [vmem:[%s1 + $0x50] sm:$0xf]
  %v37 = vld [vmem:[%s1 + $0x54] sm:$0xf]
  %v38 = vld [vmem:[%s1 + $0x58] sm:$0xf]
  %v39 = vld [vmem:[%s1 + $0x5c] sm:$0xf]
  %v40 = vld [vmem:[%s1 + $0x60] sm:$0xf]
  %v41 = vld [vmem:[%s1 + $0x64] sm:$0xf]
  %v42 = vld [vmem:[%s1 + $0x68] sm:$0xf]
  %v43 = vld [vmem:[%s1 + $0x6c] sm:$0xf]
  %v44 = vld [vmem:[%s1 + $0x70] sm:$0xf]
  %v45 = vld [vmem:[%s1 + $0x74] sm:$0xf]
  %v46 = vld [vmem:[%s1 + $0x78] sm:$0xf]
  %v47 = vld [vmem:[%s1 + $0x7c] sm:$0xf]
  %v48 = vld [vmem:[%s1 + $0x80] sm:$0xf]
  %v49 = vld [vmem:[%s1 + $0x84] sm:$0xf]
  %v50 = vld [vmem:[%s1 + $0x88] sm:$0xf]
  %v51 = vld [vmem:[%s1 + $0x8c] sm:$0xf]
  %v52 = vld [vmem:[%s1 + $0x90] sm:$0xf]
  %v53 = vld [vmem:[%s1 + $0x94] sm:$0xf]
  %v54 = vld [vmem:[%s1 + $0x98] sm:$0xf]
  %v55 = vld [vmem:[%s1 + $0x9c] sm:$0xf]
  %v56 = vld [vmem:[%s1 + $0xa0] sm:$0xf]
  %v57 = vld [vmem:[%s1 + $0xa4] sm:$0xf]
  %v58 = vld [vmem:[%s1 + $0xa8] sm:$0xf]
  %v59 = vld [vmem:[%s1 + $0xac] sm:$0xf]
  %v60 = vld [vmem:[%s1 + $0xb0] sm:$0xf]
  %v61 = vld [vmem:[%s1 + $0xb4] sm:$0xf]
  %v62 = vld [vmem:[%s1 + $0xb8] sm:$0xf]
  %v63 = vld [vmem:[%s1 + $0xbc] sm:$0xf]
  %v64 = vld [vmem:[%s1 + $0xc0] sm:$0xf]
  %v65 = vld [vmem:[%s1 + $0xc4] sm:$0xf]
  %v66 = vld [vmem:[%s1 + $0xc8] sm:$0xf]
  %v67 = vld [vmem:[%s1 + $0xcc] sm:$0xf]
  %v68 = vld [vmem:[%s1 + $0xd0] sm:$0xf]
  %v69 = vld [vmem:[%s1 + $0xd4] sm:$0xf]
  %v70 = vld [vmem:[%s1 + $0xd8] sm:$0xf]
  %v71 = vld [vmem:[%s1 + $0xdc] sm:$0xf]
  %v72 = vld [vmem:[%s1 + $0xe0] sm:$0xf]
  %v73 = vld [vmem:[%s1 + $0xe4] sm:$0xf]
  %v74 = vld [vmem:[%s1 + $0xe8] sm:$0xf]
  %v75 = vld [vmem:[%s1 + $0xec] sm:$0xf]
  %v76 = vld [vmem:[%s1 + $0xf0] sm:$0xf]
  %v77 = vld [vmem:[%s1 + $0xf4] sm:$0xf]
  %v78 = vld [vmem:[%s1 + $0xf8] sm:$0xf]
  %v79 = vld [vmem:[%s1 + $0xfc] sm:$0xf]
  %v80 = vld [vmem:[%s1 + $0x100] sm:$0xf]
  %v81 = vld [vmem:[%s1 + $0x104] sm:$0xf]
  %v82 = vld [vmem:[%s1 + $0x108] sm:$0xf]
  %v83 = vld [vmem:[%s1 + $0x10c] sm:$0xf]
  %v84 = vld [vmem:[%s1 + $0x110] sm:$0xf]
  %v85 = vld [vmem:[%s1 + $0x114] sm:$0xf]
  %v86 = vld [vmem:[%s1 + $0x118] sm:$0xf]
  %v87 = vld [vmem:[%s1 + $0x11c] sm:$0xf]
  %v88 = vld [vmem:[%s2] sm:$0x1]
  %v90 = vperm.slane %v88, 0
  %93 = vst [vmem:[#allocation1] ss:$9 sm:$0xff] %v15
  %v94 = vld [vmem:[#allocation1] sm:$0xff]
  %v95 = vld [vmem:[#allocation1 + $0x9] sm:$0xff]
  %v96 = vld [vmem:[#allocation1 + $0x12] sm:$0xff]
  %v97 = vld [vmem:[#allocation1 + $0x1b] sm:$0xff]
  %v98 = vld [vmem:[#allocation1 + $0x24] sm:$0xff]
  %v175 = vunpack.c.l.b16 %v16
  %v176 = vunpack.c.l.b16 %v17
  %v177 = vunpack.c.l.b16 %v18
  %v178 = vunpack.c.l.b16 %v19
  %v179 = vunpack.c.l.b16 %v20
  %v180 = vunpack.c.l.b16 %v21
  %v181 = vunpack.c.l.b16 %v22
  %v182 = vunpack.c.l.b16 %v23
  %v183 = vunpack.c.l.b16 %v24
  %v184 = vunpack.c.l.b16 %v25
  %v185 = vunpack.c.l.b16 %v26
  %v186 = vunpack.c.l.b16 %v27
  %v187 = vunpack.c.l.b16 %v28
  %v188 = vunpack.c.l.b16 %v29
  %v189 = vunpack.c.l.b16 %v30
  %v190 = vunpack.c.l.b16 %v31
  %v191 = vunpack.c.l.b16 %v32
  %v192 = vunpack.c.l.b16 %v33
  %v193 = vunpack.c.l.b16 %v34
  %v194 = vunpack.c.l.b16 %v35
  %v195 = vunpack.c.l.b16 %v36
  %v196 = vunpack.c.l.b16 %v37
  %v197 = vunpack.c.l.b16 %v38
  %v198 = vunpack.c.l.b16 %v39
  %v199 = vunpack.c.l.b16 %v40
  %v200 = vunpack.c.l.b16 %v41
  %v201 = vunpack.c.l.b16 %v42
  %v202 = vunpack.c.l.b16 %v43
  %v203 = vunpack.c.l.b16 %v44
  %v204 = vunpack.c.l.b16 %v45
  %v205 = vunpack.c.l.b16 %v46
  %v206 = vunpack.c.l.b16 %v47
  %v207 = vunpack.c.l.b16 %v48
  %v208 = vunpack.c.l.b16 %v49
  %v209 = vunpack.c.l.b16 %v50
  %v210 = vunpack.c.l.b16 %v51
  %v211 = vunpack.c.l.b16 %v52
  %v212 = vunpack.c.l.b16 %v53
  %v213 = vunpack.c.l.b16 %v54
  %v214 = vunpack.c.l.b16 %v55
  %v215 = vunpack.c.l.b16 %v56
  %v216 = vunpack.c.l.b16 %v57
  %v217 = vunpack.c.l.b16 %v58
  %v218 = vunpack.c.l.b16 %v59
  %v219 = vunpack.c.l.b16 %v60
  %v220 = vunpack.c.l.b16 %v61
  %v221 = vunpack.c.l.b16 %v62
  %v222 = vunpack.c.l.b16 %v63
  %v223 = vunpack.c.l.b16 %v64
  %v224 = vunpack.c.l.b16 %v65
  %v225 = vunpack.c.l.b16 %v66
  %v226 = vunpack.c.l.b16 %v67
  %v227 = vunpack.c.l.b16 %v68
  %v228 = vunpack.c.l.b16 %v69
  %v229 = vunpack.c.l.b16 %v70
  %v230 = vunpack.c.l.b16 %v71
  %v231 = vunpack.c.l.b16 %v72
  %v232 = vunpack.c.l.b16 %v73
  %v233 = vunpack.c.l.b16 %v74
  %v234 = vunpack.c.l.b16 %v75
  %v235 = vunpack.c.l.b16 %v76
  %v236 = vunpack.c.l.b16 %v77
  %v237 = vunpack.c.l.b16 %v78
  %v238 = vunpack.c.l.b16 %v79
  %v239 = vunpack.c.l.b16 %v80
  %v240 = vunpack.c.l.b16 %v81
  %v241 = vunpack.c.l.b16 %v82
  %v242 = vunpack.c.l.b16 %v83
  %v243 = vunpack.c.l.b16 %v84
  %v244 = vunpack.c.l.b16 %v85
  %v245 = vunpack.c.l.b16 %v86
  %v246 = vunpack.c.l.b16 %v87
  %v247 = vpack.c.b16 %v176, %v175
  %v248 = vpack.c.b16 %v178, %v177
  %v249 = vpack.c.b16 %v180, %v179
  %v250 = vpack.c.b16 %v182, %v181
  %v251 = vpack.c.b16 %v184, %v183
  %v252 = vpack.c.b16 %v186, %v185
  %v253 = vpack.c.b16 %v188, %v187
  %v254 = vpack.c.b16 %v190, %v189
  %v255 = vpack.c.b16 %v192, %v191
  %v256 = vpack.c.b16 %v194, %v193
  %v257 = vpack.c.b16 %v196, %v195
  %v258 = vpack.c.b16 %v198, %v197
  %v259 = vpack.c.b16 %v200, %v199
  %v260 = vpack.c.b16 %v202, %v201
  %v261 = vpack.c.b16 %v204, %v203
  %v262 = vpack.c.b16 %v206, %v205
  %v263 = vpack.c.b16 %v208, %v207
  %v264 = vpack.c.b16 %v210, %v209
  %v265 = vpack.c.b16 %v212, %v211
  %v266 = vpack.c.b16 %v214, %v213
  %v267 = vpack.c.b16 %v216, %v215
  %v268 = vpack.c.b16 %v218, %v217
  %v269 = vpack.c.b16 %v220, %v219
  %v270 = vpack.c.b16 %v222, %v221
  %v271 = vpack.c.b16 %v224, %v223
  %v272 = vpack.c.b16 %v226, %v225
  %v273 = vpack.c.b16 %v228, %v227
  %v274 = vpack.c.b16 %v230, %v229
  %v275 = vpack.c.b16 %v232, %v231
  %v276 = vpack.c.b16 %v234, %v233
  %v277 = vpack.c.b16 %v236, %v235
  %v278 = vpack.c.b16 %v238, %v237
  %v279 = vpack.c.b16 %v240, %v239
  %v280 = vpack.c.b16 %v242, %v241
  %v281 = vpack.c.b16 %v244, %v243
  %v282 = vpack.c.b16 %v246, %v245
  %vm319 = vcmask 523264
  %v320 = vsel %vm319, %v98, 0
  %322 = vmatpush.bf16.msra.mxu0 %v254
  %323 = vmatpush.bf16.msra.mxu0 %v253
  %324 = vmatpush.bf16.msra.mxu0 %v252
  %325 = vmatpush.bf16.msra.mxu0 %v251
  %326 = vmatpush.bf16.msra.mxu0 %v250
  %327 = vmatpush.bf16.msra.mxu0 %v249
  %328 = vmatpush.bf16.msra.mxu0 %v248
  %329 = vmatpush.bf16.msra.mxu0 %v247
  %330 = vmatmul.bf16.gmra.mxu0 %v94
  %v331 = vpop.f32.mrf.mxu0
  %v332 = vadd.f32 %v90, %v331
  %v333 = vpop.f32.mrf.mxu0
  %334 = vdwg.mxu0
  %335 = vmatpush.bf16.msra.mxu0 %v262
  %336 = vmatpush.bf16.msra.mxu0 %v261
  %337 = vmatpush.bf16.msra.mxu0 %v260
  %338 = vmatpush.bf16.msra.mxu0 %v259
  %339 = vmatpush.bf16.msra.mxu0 %v258
  %340 = vmatpush.bf16.msra.mxu0 %v257
  %341 = vmatpush.bf16.msra.mxu0 %v256
  %342 = vmatpush.bf16.msra.mxu0 %v255
  %343 = vmatmul.bf16.gmra.mxu0 %v95
  %v344 = vpop.f32.mrf.mxu0
  %v345 = vadd.f32 %v332, %v344
  %v346 = vpop.f32.mrf.mxu0
  %347 = vdwg.mxu0
  %348 = vmatpush.bf16.msra.mxu0 %v270
  %349 = vmatpush.bf16.msra.mxu0 %v269
  %350 = vmatpush.bf16.msra.mxu0 %v268
  %351 = vmatpush.bf16.msra.mxu0 %v267
  %352 = vmatpush.bf16.msra.mxu0 %v266
  %353 = vmatpush.bf16.msra.mxu0 %v265
  %354 = vmatpush.bf16.msra.mxu0 %v264
  %355 = vmatpush.bf16.msra.mxu0 %v263
  %356 = vmatmul.bf16.gmra.mxu0 %v96
  %v357 = vpop.f32.mrf.mxu0
  %v358 = vadd.f32 %v345, %v357
  %v359 = vpop.f32.mrf.mxu0
  %360 = vdwg.mxu0
  %361 = vmatpush.bf16.msra.mxu0 %v278
  %362 = vmatpush.bf16.msra.mxu0 %v277
  %363 = vmatpush.bf16.msra.mxu0 %v276
  %364 = vmatpush.bf16.msra.mxu0 %v275
  %365 = vmatpush.bf16.msra.mxu0 %v274
  %366 = vmatpush.bf16.msra.mxu0 %v273
  %367 = vmatpush.bf16.msra.mxu0 %v272
  %368 = vmatpush.bf16.msra.mxu0 %v271
  %369 = vmatmul.bf16.gmra.mxu0 %v97
  %v370 = vpop.f32.mrf.mxu0
  %v371 = vadd.f32 %v358, %v370
  %v372 = vpop.f32.mrf.mxu0
  %373 = vdwg.mxu0
  %374 = vmatpush.bf16.msra.mxu0 0
  %375 = vmatpush.bf16.msra.mxu0 0
  %376 = vmatpush.bf16.msra.mxu0 0
  %377 = vmatpush.bf16.msra.mxu0 0
  %378 = vmatpush.bf16.msra.mxu0 %v282
  %379 = vmatpush.bf16.msra.mxu0 %v281
  %380 = vmatpush.bf16.msra.mxu0 %v280
  %381 = vmatpush.bf16.msra.mxu0 %v279
  %382 = vmatmul.bf16.gmra.mxu0 %v320
  %v383 = vpop.f32.mrf.mxu0
  %v384 = vadd.f32 %v371, %v383
  %v385 = vpop.f32.mrf.mxu0
  %386 = vdwg.mxu0
  %v387 = vmax.f32 %v384, 0.0
  %v388 = vpack.c.bf16 %v387, %v387
  %389 = vst [vmem:[%s3] sm:$0x1] %v388
  // Predicated region
  $region14: #{actor_forward.6} parent=0 // pred_check
    _
  $region15: #{actor_forward.6} parent=0 // pred_check_branch
    %391 = sbr.rel (0) target = $region17
  $region16: #{actor_forward.6} parent=0 // pred_region
    _
  $region17: #{actor_forward.6} parent=0 // pred_fallthru
    _
  // Predicated region
  $region18: #{actor_forward.6} parent=0 // pred_check
    _
  $region19: #{actor_forward.6} parent=0 // pred_check_branch
    %393 = sbr.rel (0) target = $region21
  $region20: #{actor_forward.6} parent=0 // pred_region
    _
  $region21: #{actor_forward.6} parent=0 // pred_fallthru
    _

// kernel: actor_forward.7
$region0: #{actor_forward.7}
  #allocation0 [shape = 'u32[]', space=smem, size = 0x4, offset = 0x4, fixed_abs, tag = 'smem constant byte address 0x4 - core index']
  #allocation1 [shape = 'u32[72,128]{1,0:T(1,128)}', space=vmem, size = 0x9000, scoped, tag = 'internal scratch']
  %s0 = inlined_call_operand.vmem [shape: bf16[2,64], index: 0, kind: input, shape index: {}]
  %s1 = inlined_call_operand.vmem [shape: bf16[64,512], index: 1, kind: input, shape index: {}]
  %s2 = inlined_call_operand.vmem [shape: f32[1,512], index: 2, kind: input, shape index: {}]
  %s3 = inlined_call_operand.vmem [shape: bf16[512,128], index: 3, kind: input, shape index: {}]
  %s4 = inlined_call_operand.vmem [shape: f32[1,128], index: 4, kind: input, shape index: {}]
  %s5 = inlined_call_operand.vmem [shape: f32[2,128], index: 5, kind: output, shape index: {}]
  %s6 = sld [smem:[#allocation0]]
  $region30: #{actor_forward.7} parent=0
    _
  %s8 = ssub.s32 1, %s6
  %s9 = scalar_select 0, %s8, %s6
  // Predicated region
  $region2: #{actor_forward.7} parent=0 // pred_check
    _
  $region3: #{actor_forward.7} parent=0 // pred_check_branch
    %11 = sbr.rel (0) target = $region5
  $region4: #{actor_forward.7} parent=0 // pred_region
    _
  $region5: #{actor_forward.7} parent=0 // pred_fallthru
    _
  // Predicated region
  $region6: #{actor_forward.7} parent=0 // pred_check
    _
  $region7: #{actor_forward.7} parent=0 // pred_check_branch
    %13 = sbr.rel (0) target = $region9
  $region8: #{actor_forward.7} parent=0 // pred_region
    _
  $region9: #{actor_forward.7} parent=0 // pred_fallthru
    _
  // Predicated region
  $region10: #{actor_forward.7} parent=0 // pred_check
    _
  $region11: #{actor_forward.7} parent=0 // pred_check_branch
    %15 = sbr.rel (0) target = $region13
  $region12: #{actor_forward.7} parent=0 // pred_region
    _
  $region13: #{actor_forward.7} parent=0 // pred_fallthru
    _
  // Predicated region
  $region14: #{actor_forward.7} parent=0 // pred_check
    _
  $region15: #{actor_forward.7} parent=0 // pred_check_branch
    %17 = sbr.rel (0) target = $region17
  $region16: #{actor_forward.7} parent=0 // pred_region
    _
  $region17: #{actor_forward.7} parent=0 // pred_fallthru
    _
  // Predicated region
  $region18: #{actor_forward.7} parent=0 // pred_check
    _
  $region19: #{actor_forward.7} parent=0 // pred_check_branch
    %19 = sbr.rel (0) target = $region21
  $region20: #{actor_forward.7} parent=0 // pred_region
    _
  $region21: #{actor_forward.7} parent=0 // pred_fallthru
    _
  %v21 = vld [vmem:[%s0] sm:$0x1]
  %v22 = vld [vmem:[%s1] sm:$0xff]
  %v23 = vld [vmem:[%s1 + $0x8] sm:$0xff]
  %v24 = vld [vmem:[%s1 + $0x10] sm:$0xff]
  %v25 = vld [vmem:[%s1 + $0x18] sm:$0xff]
  %v26 = vld [vmem:[%s1 + $0x20] sm:$0xff]
  %v27 = vld [vmem:[%s1 + $0x28] sm:$0xff]
  %v28 = vld [vmem:[%s1 + $0x30] sm:$0xff]
  %v29 = vld [vmem:[%s1 + $0x38] sm:$0xff]
  %v30 = vld [vmem:[%s1 + $0x40] sm:$0xff]
  %v31 = vld [vmem:[%s1 + $0x48] sm:$0xff]
  %v32 = vld [vmem:[%s1 + $0x50] sm:$0xff]
  %v33 = vld [vmem:[%s1 + $0x58] sm:$0xff]
  %v34 = vld [vmem:[%s1 + $0x60] sm:$0xff]
  %v35 = vld [vmem:[%s1 + $0x68] sm:$0xff]
  %v36 = vld [vmem:[%s1 + $0x70] sm:$0xff]
  %v37 = vld [vmem:[%s1 + $0x78] sm:$0xff]
  %v38 = vld [vmem:[%s2] sm:$0xf]
  %v40 = vperm.slane %v38, 0
  %v41 = vperm.slane %v38, 1
  %v42 = vperm.slane %v38, 2
  %v43 = vperm.slane %v38, 3
  %v64 = vunpack.c.l.b16 %v22
  %v65 = vunpack.c.h.b16 %v22
  %v66 = vunpack.c.l.b16 %v23
  %v67 = vunpack.c.h.b16 %v23
  %v68 = vunpack.c.l.b16 %v24
  %v69 = vunpack.c.h.b16 %v24
  %v70 = vunpack.c.l.b16 %v25
  %v71 = vunpack.c.h.b16 %v25
  %v72 = vunpack.c.l.b16 %v26
  %v73 = vunpack.c.h.b16 %v26
  %v74 = vunpack.c.l.b16 %v27
  %v75 = vunpack.c.h.b16 %v27
  %v76 = vunpack.c.l.b16 %v28
  %v77 = vunpack.c.h.b16 %v28
  %v78 = vunpack.c.l.b16 %v29
  %v79 = vunpack.c.h.b16 %v29
  %v80 = vunpack.c.l.b16 %v30
  %v81 = vunpack.c.h.b16 %v30
  %v82 = vunpack.c.l.b16 %v31
  %v83 = vunpack.c.h.b16 %v31
  %v84 = vunpack.c.l.b16 %v32
  %v85 = vunpack.c.h.b16 %v32
  %v86 = vunpack.c.l.b16 %v33
  %v87 = vunpack.c.h.b16 %v33
  %v88 = vunpack.c.l.b16 %v34
  %v89 = vunpack.c.h.b16 %v34
  %v90 = vunpack.c.l.b16 %v35
  %v91 = vunpack.c.h.b16 %v35
  %v92 = vunpack.c.l.b16 %v36
  %v93 = vunpack.c.h.b16 %v36
  %v94 = vunpack.c.l.b16 %v37
  %v95 = vunpack.c.h.b16 %v37
  %v96 = vpack.c.b16 %v68, %v64
  %v97 = vpack.c.b16 %v69, %v65
  %v98 = vpack.c.b16 %v70, %v66
  %v99 = vpack.c.b16 %v71, %v67
  %v100 = vpack.c.b16 %v76, %v72
  %v101 = vpack.c.b16 %v77, %v73
  %v102 = vpack.c.b16 %v78, %v74
  %v103 = vpack.c.b16 %v79, %v75
  %v104 = vpack.c.b16 %v84, %v80
  %v105 = vpack.c.b16 %v85, %v81
  %v106 = vpack.c.b16 %v86, %v82
  %v107 = vpack.c.b16 %v87, %v83
  %v108 = vpack.c.b16 %v92, %v88
  %v109 = vpack.c.b16 %v93, %v89
  %v110 = vpack.c.b16 %v94, %v90
  %v111 = vpack.c.b16 %v95, %v91
  %vm128 = vcmask 523264
  %v130 = vsel %vm128, %v21, 0
  %132 = vmatpush.bf16.msra.mxu0 0
  %133 = vmatpush.bf16.msra.mxu0 0
  %134 = vmatpush.bf16.msra.mxu0 0
  %135 = vmatpush.bf16.msra.mxu0 0
  %136 = vmatpush.bf16.msra.mxu0 %v108
  %137 = vmatpush.bf16.msra.mxu0 %v104
  %138 = vmatpush.bf16.msra.mxu0 %v100
  %139 = vmatpush.bf16.msra.mxu0 %v96
  %140 = vmatmul.bf16.gmra.mxu0 %v130
  %v141 = vpop.f32.mrf.mxu0
  %v142 = vadd.f32 %v40, %v141
  %v143 = vpop.f32.mrf.mxu0
  %144 = vdwg.mxu0
  %145 = vmatpush.bf16.msra.mxu0 0
  %146 = vmatpush.bf16.msra.mxu0 0
  %147 = vmatpush.bf16.msra.mxu0 0
  %148 = vmatpush.bf16.msra.mxu0 0
  %149 = vmatpush.bf16.msra.mxu0 %v109
  %150 = vmatpush.bf16.msra.mxu0 %v105
  %151 = vmatpush.bf16.msra.mxu0 %v101
  %152 = vmatpush.bf16.msra.mxu0 %v97
  %153 = vmatmul.bf16.gmra.mxu0 %v130
  %v154 = vpop.f32.mrf.mxu0
  %v155 = vadd.f32 %v41, %v154
  %v156 = vpop.f32.mrf.mxu0
  %157 = vdwg.mxu0
  %158 = vmatpush.bf16.msra.mxu0 0
  %159 = vmatpush.bf16.msra.mxu0 0
  %160 = vmatpush.bf16.msra.mxu0 0
  %161 = vmatpush.bf16.msra.mxu0 0
  %162 = vmatpush.bf16.msra.mxu0 %v110
  %163 = vmatpush.bf16.msra.mxu0 %v106
  %164 = vmatpush.bf16.msra.mxu0 %v102
  %165 = vmatpush.bf16.msra.mxu0 %v98
  %166 = vmatmul.bf16.gmra.mxu0 %v130
  %v167 = vpop.f32.mrf.mxu0
  %v168 = vadd.f32 %v42, %v167
  %v169 = vpop.f32.mrf.mxu0
  %170 = vdwg.mxu0
  %171 = vmatpush.bf16.msra.mxu0 0
  %172 = vmatpush.bf16.msra.mxu0 0
  %173 = vmatpush.bf16.msra.mxu0 0
  %174 = vmatpush.bf16.msra.mxu0 0
  %175 = vmatpush.bf16.msra.mxu0 %v111
  %176 = vmatpush.bf16.msra.mxu0 %v107
  %177 = vmatpush.bf16.msra.mxu0 %v103
  %178 = vmatpush.bf16.msra.mxu0 %v99
  %179 = vmatmul.bf16.gmra.mxu0 %v130
  %v180 = vpop.f32.mrf.mxu0
  %v181 = vadd.f32 %v43, %v180
  %v182 = vpop.f32.mrf.mxu0
  %183 = vdwg.mxu0
  %v184 = vmax.f32 %v142, 0.0
  %v185 = vmax.f32 %v155, 0.0
  %v186 = vmax.f32 %v168, 0.0
  %v187 = vmax.f32 %v181, 0.0
  %v188 = vpack.c.bf16 %v184, %v184
  %v189 = vpack.c.bf16 %v185, %v185
  %v190 = vpack.c.bf16 %v186, %v186
  %v191 = vpack.c.bf16 %v187, %v187
  %v192 = vld [vmem:[%s3] sm:$0xf]
  %v193 = vld [vmem:[%s3 + $0x4] sm:$0xf]
  %v194 = vld [vmem:[%s3 + $0x8] sm:$0xf]
  %v195 = vld [vmem:[%s3 + $0xc] sm:$0xf]
  %v196 = vld [vmem:[%s3 + $0x10] sm:$0xf]
  %v197 = vld [vmem:[%s3 + $0x14] sm:$0xf]
  %v198 = vld [vmem:[%s3 + $0x18] sm:$0xf]
  %v199 = vld [vmem:[%s3 + $0x1c] sm:$0xf]
  %v200 = vld [vmem:[%s3 + $0x20] sm:$0xf]
  %v201 = vld [vmem:[%s3 + $0x24] sm:$0xf]
  %v202 = vld [vmem:[%s3 + $0x28] sm:$0xf]
  %v203 = vld [vmem:[%s3 + $0x2c] sm:$0xf]
  %v204 = vld [vmem:[%s3 + $0x30] sm:$0xf]
  %v205 = vld [vmem:[%s3 + $0x34] sm:$0xf]
  %v206 = vld [vmem:[%s3 + $0x38] sm:$0xf]
  %v207 = vld [vmem:[%s3 + $0x3c] sm:$0xf]
  %v208 = vld [vmem:[%s3 + $0x40] sm:$0xf]
  %v209 = vld [vmem:[%s3 + $0x44] sm:$0xf]
  %v210 = vld [vmem:[%s3 + $0x48] sm:$0xf]
  %v211 = vld [vmem:[%s3 + $0x4c] sm:$0xf]
  %v212 = vld [vmem:[%s3 + $0x50] sm:$0xf]
  %v213 = vld [vmem:[%s3 + $0x54] sm:$0xf]
  %v214 = vld [vmem:[%s3 + $0x58] sm:$0xf]
  %v215 = vld [vmem:[%s3 + $0x5c] sm:$0xf]
  %v216 = vld [vmem:[%s3 + $0x60] sm:$0xf]
  %v217 = vld [vmem:[%s3 + $0x64] sm:$0xf]
  %v218 = vld [vmem:[%s3 + $0x68] sm:$0xf]
  %v219 = vld [vmem:[%s3 + $0x6c] sm:$0xf]
  %v220 = vld [vmem:[%s3 + $0x70] sm:$0xf]
  %v221 = vld [vmem:[%s3 + $0x74] sm:$0xf]
  %v222 = vld [vmem:[%s3 + $0x78] sm:$0xf]
  %v223 = vld [vmem:[%s3 + $0x7c] sm:$0xf]
  %v224 = vld [vmem:[%s3 + $0x80] sm:$0xf]
  %v225 = vld [vmem:[%s3 + $0x84] sm:$0xf]
  %v226 = vld [vmem:[%s3 + $0x88] sm:$0xf]
  %v227 = vld [vmem:[%s3 + $0x8c] sm:$0xf]
  %v228 = vld [vmem:[%s3 + $0x90] sm:$0xf]
  %v229 = vld [vmem:[%s3 + $0x94] sm:$0xf]
  %v230 = vld [vmem:[%s3 + $0x98] sm:$0xf]
  %v231 = vld [vmem:[%s3 + $0x9c] sm:$0xf]
  %v232 = vld [vmem:[%s3 + $0xa0] sm:$0xf]
  %v233 = vld [vmem:[%s3 + $0xa4] sm:$0xf]
  %v234 = vld [vmem:[%s3 + $0xa8] sm:$0xf]
  %v235 = vld [vmem:[%s3 + $0xac] sm:$0xf]
  %v236 = vld [vmem:[%s3 + $0xb0] sm:$0xf]
  %v237 = vld [vmem:[%s3 + $0xb4] sm:$0xf]
  %v238 = vld [vmem:[%s3 + $0xb8] sm:$0xf]
  %v239 = vld [vmem:[%s3 + $0xbc] sm:$0xf]
  %v240 = vld [vmem:[%s3 + $0xc0] sm:$0xf]
  %v241 = vld [vmem:[%s3 + $0xc4] sm:$0xf]
  %v242 = vld [vmem:[%s3 + $0xc8] sm:$0xf]
  %v243 = vld [vmem:[%s3 + $0xcc] sm:$0xf]
  %v244 = vld [vmem:[%s3 + $0xd0] sm:$0xf]
  %v245 = vld [vmem:[%s3 + $0xd4] sm:$0xf]
  %v246 = vld [vmem:[%s3 + $0xd8] sm:$0xf]
  %v247 = vld [vmem:[%s3 + $0xdc] sm:$0xf]
  %v248 = vld [vmem:[%s3 + $0xe0] sm:$0xf]
  %v249 = vld [vmem:[%s3 + $0xe4] sm:$0xf]
  %v250 = vld [vmem:[%s3 + $0xe8] sm:$0xf]
  %v251 = vld [vmem:[%s3 + $0xec] sm:$0xf]
  %v252 = vld [vmem:[%s3 + $0xf0] sm:$0xf]
  %v253 = vld [vmem:[%s3 + $0xf4] sm:$0xf]
  %v254 = vld [vmem:[%s3 + $0xf8] sm:$0xf]
  %v255 = vld [vmem:[%s3 + $0xfc] sm:$0xf]
  %v256 = vld [vmem:[%s4] sm:$0x1]
  %v258 = vperm.slane %v256, 0
  %v324 = vunpack.c.l.b16 %v192
  %v325 = vunpack.c.l.b16 %v193
  %v326 = vunpack.c.l.b16 %v194
  %v327 = vunpack.c.l.b16 %v195
  %v328 = vunpack.c.l.b16 %v196
  %v329 = vunpack.c.l.b16 %v197
  %v330 = vunpack.c.l.b16 %v198
  %v331 = vunpack.c.l.b16 %v199
  %v332 = vunpack.c.l.b16 %v200
  %v333 = vunpack.c.l.b16 %v201
  %v334 = vunpack.c.l.b16 %v202
  %v335 = vunpack.c.l.b16 %v203
  %v336 = vunpack.c.l.b16 %v204
  %v337 = vunpack.c.l.b16 %v205
  %v338 = vunpack.c.l.b16 %v206
  %v339 = vunpack.c.l.b16 %v207
  %v340 = vunpack.c.l.b16 %v208
  %v341 = vunpack.c.l.b16 %v209
  %v342 = vunpack.c.l.b16 %v210
  %v343 = vunpack.c.l.b16 %v211
  %v344 = vunpack.c.l.b16 %v212
  %v345 = vunpack.c.l.b16 %v213
  %v346 = vunpack.c.l.b16 %v214
  %v347 = vunpack.c.l.b16 %v215
  %v348 = vunpack.c.l.b16 %v216
  %v349 = vunpack.c.l.b16 %v217
  %v350 = vunpack.c.l.b16 %v218
  %v351 = vunpack.c.l.b16 %v219
  %v352 = vunpack.c.l.b16 %v220
  %v353 = vunpack.c.l.b16 %v221
  %v354 = vunpack.c.l.b16 %v222
  %v355 = vunpack.c.l.b16 %v223
  %v356 = vunpack.c.l.b16 %v224
  %v357 = vunpack.c.l.b16 %v225
  %v358 = vunpack.c.l.b16 %v226
  %v359 = vunpack.c.l.b16 %v227
  %v360 = vunpack.c.l.b16 %v228
  %v361 = vunpack.c.l.b16 %v229
  %v362 = vunpack.c.l.b16 %v230
  %v363 = vunpack.c.l.b16 %v231
  %v364 = vunpack.c.l.b16 %v232
  %v365 = vunpack.c.l.b16 %v233
  %v366 = vunpack.c.l.b16 %v234
  %v367 = vunpack.c.l.b16 %v235
  %v368 = vunpack.c.l.b16 %v236
  %v369 = vunpack.c.l.b16 %v237
  %v370 = vunpack.c.l.b16 %v238
  %v371 = vunpack.c.l.b16 %v239
  %v372 = vunpack.c.l.b16 %v240
  %v373 = vunpack.c.l.b16 %v241
  %v374 = vunpack.c.l.b16 %v242
  %v375 = vunpack.c.l.b16 %v243
  %v376 = vunpack.c.l.b16 %v244
  %v377 = vunpack.c.l.b16 %v245
  %v378 = vunpack.c.l.b16 %v246
  %v379 = vunpack.c.l.b16 %v247
  %v380 = vunpack.c.l.b16 %v248
  %v381 = vunpack.c.l.b16 %v249
  %v382 = vunpack.c.l.b16 %v250
  %v383 = vunpack.c.l.b16 %v251
  %v384 = vunpack.c.l.b16 %v252
  %v385 = vunpack.c.l.b16 %v253
  %v386 = vunpack.c.l.b16 %v254
  %v387 = vunpack.c.l.b16 %v255
  %v388 = vpack.c.b16 %v325, %v324
  %v389 = vpack.c.b16 %v327, %v326
  %v390 = vpack.c.b16 %v329, %v328
  %v391 = vpack.c.b16 %v331, %v330
  %v392 = vpack.c.b16 %v333, %v332
  %v393 = vpack.c.b16 %v335, %v334
  %v394 = vpack.c.b16 %v337, %v336
  %v395 = vpack.c.b16 %v339, %v338
  %v396 = vpack.c.b16 %v341, %v340
  %v397 = vpack.c.b16 %v343, %v342
  %v398 = vpack.c.b16 %v345, %v344
  %v399 = vpack.c.b16 %v347, %v346
  %v400 = vpack.c.b16 %v349, %v348
  %v401 = vpack.c.b16 %v351, %v350
  %v402 = vpack.c.b16 %v353, %v352
  %v403 = vpack.c.b16 %v355, %v354
  %v404 = vpack.c.b16 %v357, %v356
  %v405 = vpack.c.b16 %v359, %v358
  %v406 = vpack.c.b16 %v361, %v360
  %v407 = vpack.c.b16 %v363, %v362
  %v408 = vpack.c.b16 %v365, %v364
  %v409 = vpack.c.b16 %v367, %v366
  %v410 = vpack.c.b16 %v369, %v368
  %v411 = vpack.c.b16 %v371, %v370
  %v412 = vpack.c.b16 %v373, %v372
  %v413 = vpack.c.b16 %v375, %v374
  %v414 = vpack.c.b16 %v377, %v376
  %v415 = vpack.c.b16 %v379, %v378
  %v416 = vpack.c.b16 %v381, %v380
  %v417 = vpack.c.b16 %v383, %v382
  %v418 = vpack.c.b16 %v385, %v384
  %v419 = vpack.c.b16 %v387, %v386
  %452 = vmatpush.bf16.msra.mxu0 %v395
  %453 = vmatpush.bf16.msra.mxu0 %v394
  %454 = vmatpush.bf16.msra.mxu0 %v393
  %455 = vmatpush.bf16.msra.mxu0 %v392
  %456 = vmatpush.bf16.msra.mxu0 %v391
  %457 = vmatpush.bf16.msra.mxu0 %v390
  %458 = vmatpush.bf16.msra.mxu0 %v389
  %459 = vmatpush.bf16.msra.mxu0 %v388
  %460 = vmatmul.bf16.gmra.mxu0 %v188
  %v461 = vpop.f32.mrf.mxu0
  %v462 = vadd.f32 %v258, %v461
  %v463 = vpop.f32.mrf.mxu0
  %464 = vdwg.mxu0
  %465 = vmatpush.bf16.msra.mxu0 %v403
  %466 = vmatpush.bf16.msra.mxu0 %v402
  %467 = vmatpush.bf16.msra.mxu0 %v401
  %468 = vmatpush.bf16.msra.mxu0 %v400
  %469 = vmatpush.bf16.msra.mxu0 %v399
  %470 = vmatpush.bf16.msra.mxu0 %v398
  %471 = vmatpush.bf16.msra.mxu0 %v397
  %472 = vmatpush.bf16.msra.mxu0 %v396
  %473 = vmatmul.bf16.gmra.mxu0 %v189
  %v474 = vpop.f32.mrf.mxu0
  %v475 = vadd.f32 %v462, %v474
  %v476 = vpop.f32.mrf.mxu0
  %477 = vdwg.mxu0
  %478 = vmatpush.bf16.msra.mxu0 %v411
  %479 = vmatpush.bf16.msra.mxu0 %v410
  %480 = vmatpush.bf16.msra.mxu0 %v409
  %481 = vmatpush.bf16.msra.mxu0 %v408
  %482 = vmatpush.bf16.msra.mxu0 %v407
  %483 = vmatpush.bf16.msra.mxu0 %v406
  %484 = vmatpush.bf16.msra.mxu0 %v405
  %485 = vmatpush.bf16.msra.mxu0 %v404
  %486 = vmatmul.bf16.gmra.mxu0 %v190
  %v487 = vpop.f32.mrf.mxu0
  %v488 = vadd.f32 %v475, %v487
  %v489 = vpop.f32.mrf.mxu0
  %490 = vdwg.mxu0
  %491 = vmatpush.bf16.msra.mxu0 %v419
  %492 = vmatpush.bf16.msra.mxu0 %v418
  %493 = vmatpush.bf16.msra.mxu0 %v417
  %494 = vmatpush.bf16.msra.mxu0 %v416
  %495 = vmatpush.bf16.msra.mxu0 %v415
  %496 = vmatpush.bf16.msra.mxu0 %v414
  %497 = vmatpush.bf16.msra.mxu0 %v413
  %498 = vmatpush.bf16.msra.mxu0 %v412
  %499 = vmatmul.bf16.gmra.mxu0 %v191
  %v500 = vpop.f32.mrf.mxu0
  %v501 = vadd.f32 %v488, %v500
  %v502 = vpop.f32.mrf.mxu0
  %503 = vdwg.mxu0
  %v504 = vlaneseq
  %v505 = vand.u32 %v504, 127
  %vm506 = vcmp.ge.s32.totalorder %v505, 0
  %vm507 = vcmp.lt.s32.totalorder %v505, 3
  %vm508 = vmand %vm506, %vm507
  %v509 = vsel %vm508, %v501, -inf
  %vm510 = vcmask 1041408
  %v511 = vsel %vm510, %v509, -inf
  %512 = vmax.xlane.f32.xlu0 %v511
  %v513 = vpop.xlane.xlu0 %512
  %v514 = vsub.f32 %v509, %v513
  %v515 = vmul.f32 %v514, 1.442695
  %v516 = vpow.pop %v515
  %v517 = vsel %vm508, %v516, 0.0
  %v518 = vsel %vm510, %v517, 0.0
  %519 = vadd.xlane.f32.xlu0 %v518
  %v520 = vpop.xlane.xlu0 %519
  %v521 = vrcp.pop %v520
  %v522 = vmul.f32 %v520, %v521
  %v523 = vsub.f32 2.0, %v522
  %v524 = vmul.f32 %v521, %v523
  %v525 = vmul.f32 %v517, %v524
  %v526 = vadd.f32 %v525, 0.0
  %vm527 = vcmp.ge.s32.totalorder %v505, 3
  %vm528 = vcmp.lt.s32.totalorder %v505, 6
  %vm529 = vmand %vm527, %vm528
  %v530 = vsel %vm529, %v501, -inf
  %v531 = vsel %vm510, %v530, -inf
  %532 = vmax.xlane.f32.xlu0 %v531
  %v533 = vpop.xlane.xlu0 %532
  %v534 = vsub.f32 %v530, %v533
  %v535 = vmul.f32 %v534, 1.442695
  %v536 = vpow.pop %v535
  %v537 = vsel %vm529, %v536, 0.0
  %v538 = vsel %vm510, %v537, 0.0
  %539 = vadd.xlane.f32.xlu0 %v538
  %v540 = vpop.xlane.xlu0 %539
  %v541 = vrcp.pop %v540
  %v542 = vmul.f32 %v540, %v541
  %v543 = vsub.f32 2.0, %v542
  %v544 = vmul.f32 %v541, %v543
  %v545 = vmul.f32 %v537, %v544
  %v546 = vadd.f32 %v526, %v545
  %vm547 = vcmp.ge.s32.totalorder %v505, 6
  %vm548 = vcmp.lt.s32.totalorder %v505, 8
  %vm549 = vmand %vm547, %vm548
  %v550 = vsel %vm549, %v501, -inf
  %v551 = vsel %vm510, %v550, -inf
  %552 = vmax.xlane.f32.xlu0 %v551
  %v553 = vpop.xlane.xlu0 %552
  %v554 = vsub.f32 %v550, %v553
  %v555 = vmul.f32 %v554, 1.442695
  %v556 = vpow.pop %v555
  %v557 = vsel %vm549, %v556, 0.0
  %v558 = vsel %vm510, %v557, 0.0
  %559 = vadd.xlane.f32.xlu0 %v558
  %v560 = vpop.xlane.xlu0 %559
  %v561 = vrcp.pop %v560
  %v562 = vmul.f32 %v560, %v561
  %v563 = vsub.f32 2.0, %v562
  %v564 = vmul.f32 %v561, %v563
  %v565 = vmul.f32 %v557, %v564
  %v566 = vadd.f32 %v546, %v565
  %567 = vst [vmem:[%s5] sm:$0x3] %v566
  // Predicated region
  $region22: #{actor_forward.7} parent=0 // pred_check
    _
  $region23: #{actor_forward.7} parent=0 // pred_check_branch
    %569 = sbr.rel (0) target = $region25
  $region24: #{actor_forward.7} parent=0 // pred_region
    _
  $region25: #{actor_forward.7} parent=0 // pred_fallthru
    _
  // Predicated region
  $region26: #{actor_forward.7} parent=0 // pred_check
    _
  $region27: #{actor_forward.7} parent=0 // pred_check_branch
    %571 = sbr.rel (0) target = $region29
  $region28: #{actor_forward.7} parent=0 // pred_region
    _
  $region29: #{actor_forward.7} parent=0 // pred_fallthru
    _

</llo_original>
